<compile_context>
chip_gen: v7x
topology: tpu7x:2x2x1
jax: 0.10.0
libtpu: 0.0.40
codegen_flags: <defaults>
</compile_context>

<pallas_src>
import functools
import math

import jax
import jax.numpy as jnp
from jax import lax
from jax.experimental import pallas as pl
from jax.experimental.pallas import tpu as pltpu


# ----------------------------------------------------------------------------
# Kernel
# ----------------------------------------------------------------------------
def _dip_gru_kernel(lens_ref, x_ref, wih_ref, whr_ref, whz_ref, whn_ref,
                    bcomb_ref, bhn_ref, h_out_ref,
                    gr_scr, gz_scr, gn_scr, *, seq, batch, hidden):
    """Masked-GRU final hidden state; whole sequence in a single invocation.

    lens_ref : (B, 1)   int32  per-sequence length
    x_ref    : (S*B, F) f32    time-major slab, row = s*B + b
    wih_ref  : (F, 3H)  f32    W_ih^T, gate order (r, z, n)
    wh{r,z,n}_ref : (H, H) f32 per-gate W_hh^T
    bcomb_ref: (1, 3H)  f32    [b_ir+b_hr, b_iz+b_hz, b_in]
    bhn_ref  : (1, H)   f32    b_hn (must stay inside the r*(...) term)
    h_out_ref: (B, H)   f32
    g{r,z,n}_scr : (S*B, H) f32 scratch for the hoisted input projection
    """
    B, H, S = batch, hidden, seq

    # ---- pre-pass: input projection for ALL time steps (one MXU matmul) ----
    gi = jnp.dot(x_ref[...], wih_ref[...],
                 preferred_element_type=jnp.float32) + bcomb_ref[...]  # (S*B, 3H)
    # Gate split done once, outside the serial loop; the loop below only ever
    # touches lane-aligned (B, H) tiles.
    gr_scr[...] = gi[:, 0:H]
    gz_scr[...] = gi[:, H:2 * H]
    gn_scr[...] = gi[:, 2 * H:3 * H]

    # loop-invariant loads, hoisted out of the recurrence
    w_hr = whr_ref[...]
    w_hz = whz_ref[...]
    w_hn = whn_ref[...]
    b_hn = bhn_ref[...]
    lens = lens_ref[...]                    # (B, 1) int32

    def step(t, h_prev):
        row = t * B
        i_r = gr_scr[pl.ds(row, B), :]      # (B, H), lane-aligned
        i_z = gz_scr[pl.ds(row, B), :]
        i_n = gn_scr[pl.ds(row, B), :]

        # only the h-dependent matmuls remain on the serial critical path
        h_r = jnp.dot(h_prev, w_hr, preferred_element_type=jnp.float32)
        h_z = jnp.dot(h_prev, w_hz, preferred_element_type=jnp.float32)
        h_n = jnp.dot(h_prev, w_hn, preferred_element_type=jnp.float32) + b_hn

        r = jax.nn.sigmoid(i_r + h_r)
        z = jax.nn.sigmoid(i_z + h_z)
        n = jnp.tanh(i_n + r * h_n)
        h_new = (1.0 - z) * n + z * h_prev

        # pack_padded_sequence semantics: freeze h once t >= seq_len[b]
        return jnp.where(t < lens, h_new, h_prev)

    h0 = jnp.zeros((B, H), jnp.float32)
    h_final = lax.fori_loop(0, S, step, h0, unroll=True)

    # single output store (previously one per time step)
    h_out_ref[...] = h_final.astype(h_out_ref.dtype)


# ----------------------------------------------------------------------------
# Wrapper / parameter packing
# ----------------------------------------------------------------------------
def _pack_gru_params(w_ih, w_hh, b_ih, b_hh):
    """One-time (init) restructuring of PyTorch-layout GRU parameters."""
    H = w_hh.shape[1]
    w_ih = jnp.asarray(w_ih, jnp.float32)
    w_hh = jnp.asarray(w_hh, jnp.float32)
    b_ih = jnp.asarray(b_ih, jnp.float32)
    b_hh = jnp.asarray(b_hh, jnp.float32)

    wih_t = w_ih.T                                   # (F, 3H), gate order r,z,n
    whr = w_hh[0:H, :].T                             # (H, H)
    whz = w_hh[H:2 * H, :].T
    whn = w_hh[2 * H:3 * H, :].T
    # fold b_hh_r / b_hh_z into the input-side bias; b_hh_n must stay separate
    b_comb = jnp.concatenate(
        [b_ih[0:H] + b_hh[0:H],
         b_ih[H:2 * H] + b_hh[H:2 * H],
         b_ih[2 * H:3 * H]]).reshape(1, 3 * H)
    b_hn = b_hh[2 * H:3 * H].reshape(1, H)
    return (wih_t, whr, whz, whn, b_comb, b_hn)


@jax.jit
def _dip_forward_impl(x, seq_lens, packed_params):
    """x: (B, S, F) f32, seq_lens: (B,) int -> final hidden state (B, H)."""
    B, S, F = x.shape
    H = packed_params[1].shape[0]

    # time-major 2-D slab (row = s*B + b): one tiny fused copy that lets the
    # kernel hoist the whole input projection into a single matmul and read
    # each time step as a contiguous, lane-aligned block.
    x_tm = jnp.swapaxes(x, 0, 1).reshape(S * B, F).astype(jnp.float32)
    lens2 = seq_lens.astype(jnp.int32).reshape(B, 1)

    kernel = functools.partial(_dip_gru_kernel, seq=S, batch=B, hidden=H)
    vmem_spec = pl.BlockSpec(memory_space=pltpu.MemorySpace.VMEM)

    return pl.pallas_call(
        kernel,
        out_shape=jax.ShapeDtypeStruct((B, H), jnp.float32),
        in_specs=[vmem_spec] * 8,
        out_specs=vmem_spec,
        scratch_shapes=[pltpu.VMEM((S * B, H), jnp.float32)] * 3,
    )(lens2, x_tm, *packed_params)


class RNNPallas:
    """Holds `layers` independent single-layer GRU parameter sets
    (PyTorch: nn.GRU(in_feat, in_feat, 1, batch_first=True) per layer)."""

    def __init__(self, in_feat=32, hid_feat=32, layers=2, number=1, seed=0):
        # NOTE: the PyTorch module builds nn.GRU(in_feat, in_feat, 1), so the
        # hidden size equals in_feat regardless of hid_feat.
        self.in_feat = in_feat
        self.hidden = in_feat
        self.layers = layers
        self.number = number

        key = jax.random.PRNGKey(seed)
        bound = 1.0 / math.sqrt(self.hidden)
        self.raw_params = []      # PyTorch layout, kept for reference checks
        self.packed_params = []   # kernel layout, built ONCE here, not per call
        for _ in range(layers):
            key, k1, k2, k3, k4 = jax.random.split(key, 5)
            w_ih = jax.random.uniform(k1, (3 * self.hidden, self.in_feat),
                                      jnp.float32, -bound, bound)
            w_hh = jax.random.uniform(k2, (3 * self.hidden, self.hidden),
                                      jnp.float32, -bound, bound)
            b_ih = jax.random.uniform(k3, (3 * self.hidden,),
                                      jnp.float32, -bound, bound)
            b_hh = jax.random.uniform(k4, (3 * self.hidden,),
                                      jnp.float32, -bound, bound)
            self.raw_params.append((w_ih, w_hh, b_ih, b_hh))
            self.packed_params.append(_pack_gru_params(w_ih, w_hh, b_ih, b_hh))


class DIPPallas:
    """JAX/Pallas port of DRL_rec/DIP.py::DIP (forward only)."""

    def __init__(self, rnns: RNNPallas):
        self.rnns = rnns

    def __call__(self, inputs, seq_lens_, z):
        x = jnp.asarray(inputs, jnp.float32)
        if x.ndim == 2:                       # (S, F) -> batch of one
            x = x[None]
        lens = jnp.asarray(seq_lens_)
        # The PyTorch sort / pack_padded_sequence / index_select-unsort only
        # serves the packed-input API; the in-kernel length mask is
        # numerically identical and keeps the batch in its original order.
        h = _dip_forward_impl(x, lens, tuple(self.rnns.packed_params[z]))
        # mirrors `users_preference = h.squeeze(dim=0)`
        return jnp.squeeze(h, axis=0) if h.shape[0] == 1 else h


# ----------------------------------------------------------------------------
# Pure-JAX reference (== pack_padded_sequence GRU final hidden state)
# ----------------------------------------------------------------------------
def _dip_ref(x, seq_lens, w_ih, w_hh, b_ih, b_hh):
    B, S, F = x.shape
    H = w_hh.shape[1]
    hp = lax.Precision.HIGHEST
    h = jnp.zeros((B, H), jnp.float32)
    for t in range(S):
        x_t = x[:, t, :]
        gi = jnp.dot(x_t, w_ih.T, precision=hp) + b_ih
        gh = jnp.dot(h, w_hh.T, precision=hp) + b_hh
        r = jax.nn.sigmoid(gi[:, :H] + gh[:, :H])
        z = jax.nn.sigmoid(gi[:, H:2 * H] + gh[:, H:2 * H])
        n = jnp.tanh(gi[:, 2 * H:] + r * gh[:, 2 * H:])
        h_new = (1.0 - z) * n + z * h
        h = jnp.where((t < seq_lens)[:, None], h_new, h)
    return h


if __name__ == "__main__":
    in_feat = 32
    seq = 8
    batch = 2

    rnns = RNNPallas(in_feat=in_feat, hid_feat=in_feat, layers=2, seed=0)
    dip = DIPPallas(rnns)

    key = jax.random.PRNGKey(0)
    k_x, k_x1 = jax.random.split(key)
    inputs = jax.random.normal(k_x, (batch, seq, in_feat), jnp.float32)
    seq_lens = jnp.array([8, 5], jnp.int32)     # variable lengths, padded batch

    out = dip(inputs, seq_lens, z=0)
    jax.block_until_ready(out)
    assert out.shape == (batch, in_feat), out.shape

    w_ih, w_hh, b_ih, b_hh = rnns.raw_params[0]
    ref = _dip_ref(inputs, seq_lens, w_ih, w_hh, b_ih, b_hh)
    err = float(jnp.max(jnp.abs(out - ref)))
    assert err < 1e-4, err

    # second layer + batch-of-one path (exercises the squeeze(dim=0) branch)
    x1 = jax.random.normal(k_x1, (1, seq, in_feat), jnp.float32)
    lens1 = jnp.array([6], jnp.int32)
    out1 = dip(x1, lens1, z=1)
    jax.block_until_ready(out1)
    assert out1.shape == (in_feat,), out1.shape
    w_ih, w_hh, b_ih, b_hh = rnns.raw_params[1]
    ref1 = _dip_ref(x1, lens1, w_ih, w_hh, b_ih, b_hh)[0]
    err1 = float(jnp.max(jnp.abs(out1 - ref1)))
    assert err1 < 1e-4, err1

    print("KERNEL_OK")
</pallas_src>

<mosaic_0001>
module attributes {stable_mosaic.version = 11 : i64} {
  func.func @_dip_gru_kernel(%arg0: memref<2x1xi32, #tpu.memory_space<vmem>>, %arg1: memref<16x32xf32, #tpu.memory_space<vmem>>, %arg2: memref<32x96xf32, #tpu.memory_space<vmem>>, %arg3: memref<32x32xf32, #tpu.memory_space<vmem>>, %arg4: memref<32x32xf32, #tpu.memory_space<vmem>>, %arg5: memref<32x32xf32, #tpu.memory_space<vmem>>, %arg6: memref<1x96xf32, #tpu.memory_space<vmem>>, %arg7: memref<1x32xf32, #tpu.memory_space<vmem>>, %arg8: memref<2x32xf32, #tpu.memory_space<vmem>>, %arg9: memref<16x32xf32, #tpu.memory_space<vmem>>, %arg10: memref<16x32xf32, #tpu.memory_space<vmem>>, %arg11: memref<16x32xf32, #tpu.memory_space<vmem>>) attributes {dimension_semantics = [], scalar_prefetch = 0 : i64, scratch_operands = 3 : i64, tpu.core_type = #tpu.core_type<tc>} {
    %c0 = arith.constant 0 : index
    %c0_0 = arith.constant 0 : index
    %0 = vector.load %arg1[%c0, %c0_0] : memref<16x32xf32, #tpu.memory_space<vmem>>, vector<16x32xf32>
    %c0_1 = arith.constant 0 : index
    %c0_2 = arith.constant 0 : index
    %1 = vector.load %arg2[%c0_1, %c0_2] : memref<32x96xf32, #tpu.memory_space<vmem>>, vector<32x96xf32>
    %cst = arith.constant dense<0.000000e+00> : vector<16x96xf32>
    %2 = tpu.matmul %0, %1, %cst {dimension_numbers = #tpu.dot_dimension_numbers<[1], [0], [0], [1], [0, 0, 1, 1], [], []>} : vector<16x32xf32>, vector<32x96xf32>, vector<16x96xf32> -> vector<16x96xf32>
    %c0_3 = arith.constant 0 : index
    %c0_4 = arith.constant 0 : index
    %3 = vector.load %arg6[%c0_3, %c0_4] : memref<1x96xf32, #tpu.memory_space<vmem>>, vector<1x96xf32>
    %4 = vector.broadcast %3 : vector<1x96xf32> to vector<16x96xf32>
    %5 = arith.addf %2, %4 : vector<16x96xf32>
    %6 = vector.extract_strided_slice %5 {offsets = [0, 0], sizes = [16, 32], strides = [1, 1]} : vector<16x96xf32> to vector<16x32xf32>
    %c0_5 = arith.constant 0 : index
    %c0_6 = arith.constant 0 : index
    %7 = vector.load %arg9[%c0_5, %c0_6] : memref<16x32xf32, #tpu.memory_space<vmem>>, vector<16x32xf32>
    tpu.vector_store %arg9[%c0_5, %c0_6], %6 {strides = array<i32>} : memref<16x32xf32, #tpu.memory_space<vmem>>, vector<16x32xf32>,
    %8 = vector.extract_strided_slice %5 {offsets = [0, 32], sizes = [16, 32], strides = [1, 1]} : vector<16x96xf32> to vector<16x32xf32>
    %c0_7 = arith.constant 0 : index
    %c0_8 = arith.constant 0 : index
    %9 = vector.load %arg10[%c0_7, %c0_8] : memref<16x32xf32, #tpu.memory_space<vmem>>, vector<16x32xf32>
    tpu.vector_store %arg10[%c0_7, %c0_8], %8 {strides = array<i32>} : memref<16x32xf32, #tpu.memory_space<vmem>>, vector<16x32xf32>,
    %10 = vector.extract_strided_slice %5 {offsets = [0, 64], sizes = [16, 32], strides = [1, 1]} : vector<16x96xf32> to vector<16x32xf32>
    %c0_9 = arith.constant 0 : index
    %c0_10 = arith.constant 0 : index
    %11 = vector.load %arg11[%c0_9, %c0_10] : memref<16x32xf32, #tpu.memory_space<vmem>>, vector<16x32xf32>
    tpu.vector_store %arg11[%c0_9, %c0_10], %10 {strides = array<i32>} : memref<16x32xf32, #tpu.memory_space<vmem>>, vector<16x32xf32>,
    %c0_11 = arith.constant 0 : index
    %c0_12 = arith.constant 0 : index
    %12 = vector.load %arg3[%c0_11, %c0_12] : memref<32x32xf32, #tpu.memory_space<vmem>>, vector<32x32xf32>
    %c0_13 = arith.constant 0 : index
    %c0_14 = arith.constant 0 : index
    %13 = vector.load %arg4[%c0_13, %c0_14] : memref<32x32xf32, #tpu.memory_space<vmem>>, vector<32x32xf32>
    %c0_15 = arith.constant 0 : index
    %c0_16 = arith.constant 0 : index
    %14 = vector.load %arg5[%c0_15, %c0_16] : memref<32x32xf32, #tpu.memory_space<vmem>>, vector<32x32xf32>
    %c0_17 = arith.constant 0 : index
    %c0_18 = arith.constant 0 : index
    %15 = vector.load %arg7[%c0_17, %c0_18] : memref<1x32xf32, #tpu.memory_space<vmem>>, vector<1x32xf32>
    %c0_19 = arith.constant 0 : index
    %c0_20 = arith.constant 0 : index
    %16 = vector.load %arg0[%c0_19, %c0_20] : memref<2x1xi32, #tpu.memory_space<vmem>>, vector<2x1xi32>
    %cst_21 = arith.constant 0.000000e+00 : f32
    %17 = vector.broadcast %cst_21 : f32 to vector<2x32xf32>
    %c0_i32 = arith.constant 0 : i32
    %c2_i32 = arith.constant 2 : i32
    %18 = arith.muli %c0_i32, %c2_i32 : i32
    %19 = arith.index_cast %18 : i32 to index
    %c0_22 = arith.constant 0 : index
    %20 = vector.load %arg9[%19, %c0_22] : memref<16x32xf32, #tpu.memory_space<vmem>>, vector<2x32xf32>
    %21 = arith.index_cast %18 : i32 to index
    %c0_23 = arith.constant 0 : index
    %22 = vector.load %arg10[%21, %c0_23] : memref<16x32xf32, #tpu.memory_space<vmem>>, vector<2x32xf32>
    %23 = arith.index_cast %18 : i32 to index
    %c0_24 = arith.constant 0 : index
    %24 = vector.load %arg11[%23, %c0_24] : memref<16x32xf32, #tpu.memory_space<vmem>>, vector<2x32xf32>
    %cst_25 = arith.constant dense<0.000000e+00> : vector<2x32xf32>
    %25 = tpu.matmul %17, %12, %cst_25 {dimension_numbers = #tpu.dot_dimension_numbers<[1], [0], [0], [1], [0, 0, 1, 1], [], []>} : vector<2x32xf32>, vector<32x32xf32>, vector<2x32xf32> -> vector<2x32xf32>
    %cst_26 = arith.constant dense<0.000000e+00> : vector<2x32xf32>
    %26 = tpu.matmul %17, %13, %cst_26 {dimension_numbers = #tpu.dot_dimension_numbers<[1], [0], [0], [1], [0, 0, 1, 1], [], []>} : vector<2x32xf32>, vector<32x32xf32>, vector<2x32xf32> -> vector<2x32xf32>
    %cst_27 = arith.constant dense<0.000000e+00> : vector<2x32xf32>
    %27 = tpu.matmul %17, %14, %cst_27 {dimension_numbers = #tpu.dot_dimension_numbers<[1], [0], [0], [1], [0, 0, 1, 1], [], []>} : vector<2x32xf32>, vector<32x32xf32>, vector<2x32xf32> -> vector<2x32xf32>
    %28 = vector.broadcast %15 : vector<1x32xf32> to vector<2x32xf32>
    %29 = arith.addf %27, %28 : vector<2x32xf32>
    %30 = arith.addf %20, %25 : vector<2x32xf32>
    %31 = arith.negf %30 : vector<2x32xf32>
    %32 = math.exp %31 : vector<2x32xf32>
    %cst_28 = arith.constant 1.000000e+00 : f32
    %33 = vector.broadcast %cst_28 : f32 to vector<2x32xf32>
    %34 = arith.addf %33, %32 : vector<2x32xf32>
    %35 = arith.divf %33, %34 : vector<2x32xf32>
    %36 = arith.addf %22, %26 : vector<2x32xf32>
    %37 = arith.negf %36 : vector<2x32xf32>
    %38 = math.exp %37 : vector<2x32xf32>
    %cst_29 = arith.constant 1.000000e+00 : f32
    %39 = vector.broadcast %cst_29 : f32 to vector<2x32xf32>
    %40 = arith.addf %39, %38 : vector<2x32xf32>
    %41 = arith.divf %39, %40 : vector<2x32xf32>
    %42 = arith.mulf %35, %29 : vector<2x32xf32>
    %43 = arith.addf %24, %42 : vector<2x32xf32>
    %44 = math.tanh %43 : vector<2x32xf32>
    %cst_30 = arith.constant 1.000000e+00 : f32
    %45 = vector.broadcast %cst_30 : f32 to vector<2x32xf32>
    %46 = arith.subf %45, %41 : vector<2x32xf32>
    %47 = arith.mulf %46, %44 : vector<2x32xf32>
    %48 = arith.mulf %41, %17 : vector<2x32xf32>
    %49 = arith.addf %47, %48 : vector<2x32xf32>
    %50 = vector.broadcast %c0_i32 : i32 to vector<2x1xi32>
    %51 = arith.cmpi slt, %50, %16 : vector<2x1xi32>
    %52 = vector.shape_cast %51 : vector<2x1xi1> to vector<2x1xi1>
    %53 = vector.broadcast %52 : vector<2x1xi1> to vector<2x32xi1>
    %54 = arith.select %53, %49, %17 : vector<2x32xi1>, vector<2x32xf32>
    %c1_i32 = arith.constant 1 : i32
    %c2_i32_31 = arith.constant 2 : i32
    %55 = arith.muli %c1_i32, %c2_i32_31 : i32
    %56 = arith.index_cast %55 : i32 to index
    %c0_32 = arith.constant 0 : index
    %57 = vector.load %arg9[%56, %c0_32] : memref<16x32xf32, #tpu.memory_space<vmem>>, vector<2x32xf32>
    %58 = arith.index_cast %55 : i32 to index
    %c0_33 = arith.constant 0 : index
    %59 = vector.load %arg10[%58, %c0_33] : memref<16x32xf32, #tpu.memory_space<vmem>>, vector<2x32xf32>
    %60 = arith.index_cast %55 : i32 to index
    %c0_34 = arith.constant 0 : index
    %61 = vector.load %arg11[%60, %c0_34] : memref<16x32xf32, #tpu.memory_space<vmem>>, vector<2x32xf32>
    %cst_35 = arith.constant dense<0.000000e+00> : vector<2x32xf32>
    %62 = tpu.matmul %54, %12, %cst_35 {dimension_numbers = #tpu.dot_dimension_numbers<[1], [0], [0], [1], [0, 0, 1, 1], [], []>} : vector<2x32xf32>, vector<32x32xf32>, vector<2x32xf32> -> vector<2x32xf32>
    %cst_36 = arith.constant dense<0.000000e+00> : vector<2x32xf32>
    %63 = tpu.matmul %54, %13, %cst_36 {dimension_numbers = #tpu.dot_dimension_numbers<[1], [0], [0], [1], [0, 0, 1, 1], [], []>} : vector<2x32xf32>, vector<32x32xf32>, vector<2x32xf32> -> vector<2x32xf32>
    %cst_37 = arith.constant dense<0.000000e+00> : vector<2x32xf32>
    %64 = tpu.matmul %54, %14, %cst_37 {dimension_numbers = #tpu.dot_dimension_numbers<[1], [0], [0], [1], [0, 0, 1, 1], [], []>} : vector<2x32xf32>, vector<32x32xf32>, vector<2x32xf32> -> vector<2x32xf32>
    %65 = vector.broadcast %15 : vector<1x32xf32> to vector<2x32xf32>
    %66 = arith.addf %64, %65 : vector<2x32xf32>
    %67 = arith.addf %57, %62 : vector<2x32xf32>
    %68 = arith.negf %67 : vector<2x32xf32>
    %69 = math.exp %68 : vector<2x32xf32>
    %cst_38 = arith.constant 1.000000e+00 : f32
    %70 = vector.broadcast %cst_38 : f32 to vector<2x32xf32>
    %71 = arith.addf %70, %69 : vector<2x32xf32>
    %72 = arith.divf %70, %71 : vector<2x32xf32>
    %73 = arith.addf %59, %63 : vector<2x32xf32>
    %74 = arith.negf %73 : vector<2x32xf32>
    %75 = math.exp %74 : vector<2x32xf32>
    %cst_39 = arith.constant 1.000000e+00 : f32
    %76 = vector.broadcast %cst_39 : f32 to vector<2x32xf32>
    %77 = arith.addf %76, %75 : vector<2x32xf32>
    %78 = arith.divf %76, %77 : vector<2x32xf32>
    %79 = arith.mulf %72, %66 : vector<2x32xf32>
    %80 = arith.addf %61, %79 : vector<2x32xf32>
    %81 = math.tanh %80 : vector<2x32xf32>
    %cst_40 = arith.constant 1.000000e+00 : f32
    %82 = vector.broadcast %cst_40 : f32 to vector<2x32xf32>
    %83 = arith.subf %82, %78 : vector<2x32xf32>
    %84 = arith.mulf %83, %81 : vector<2x32xf32>
    %85 = arith.mulf %78, %54 : vector<2x32xf32>
    %86 = arith.addf %84, %85 : vector<2x32xf32>
    %87 = vector.broadcast %c1_i32 : i32 to vector<2x1xi32>
    %88 = arith.cmpi slt, %87, %16 : vector<2x1xi32>
    %89 = vector.shape_cast %88 : vector<2x1xi1> to vector<2x1xi1>
    %90 = vector.broadcast %89 : vector<2x1xi1> to vector<2x32xi1>
    %91 = arith.select %90, %86, %54 : vector<2x32xi1>, vector<2x32xf32>
    %c2_i32_41 = arith.constant 2 : i32
    %c2_i32_42 = arith.constant 2 : i32
    %92 = arith.muli %c2_i32_41, %c2_i32_42 : i32
    %93 = arith.index_cast %92 : i32 to index
    %c0_43 = arith.constant 0 : index
    %94 = vector.load %arg9[%93, %c0_43] : memref<16x32xf32, #tpu.memory_space<vmem>>, vector<2x32xf32>
    %95 = arith.index_cast %92 : i32 to index
    %c0_44 = arith.constant 0 : index
    %96 = vector.load %arg10[%95, %c0_44] : memref<16x32xf32, #tpu.memory_space<vmem>>, vector<2x32xf32>
    %97 = arith.index_cast %92 : i32 to index
    %c0_45 = arith.constant 0 : index
    %98 = vector.load %arg11[%97, %c0_45] : memref<16x32xf32, #tpu.memory_space<vmem>>, vector<2x32xf32>
    %cst_46 = arith.constant dense<0.000000e+00> : vector<2x32xf32>
    %99 = tpu.matmul %91, %12, %cst_46 {dimension_numbers = #tpu.dot_dimension_numbers<[1], [0], [0], [1], [0, 0, 1, 1], [], []>} : vector<2x32xf32>, vector<32x32xf32>, vector<2x32xf32> -> vector<2x32xf32>
    %cst_47 = arith.constant dense<0.000000e+00> : vector<2x32xf32>
    %100 = tpu.matmul %91, %13, %cst_47 {dimension_numbers = #tpu.dot_dimension_numbers<[1], [0], [0], [1], [0, 0, 1, 1], [], []>} : vector<2x32xf32>, vector<32x32xf32>, vector<2x32xf32> -> vector<2x32xf32>
    %cst_48 = arith.constant dense<0.000000e+00> : vector<2x32xf32>
    %101 = tpu.matmul %91, %14, %cst_48 {dimension_numbers = #tpu.dot_dimension_numbers<[1], [0], [0], [1], [0, 0, 1, 1], [], []>} : vector<2x32xf32>, vector<32x32xf32>, vector<2x32xf32> -> vector<2x32xf32>
    %102 = vector.broadcast %15 : vector<1x32xf32> to vector<2x32xf32>
    %103 = arith.addf %101, %102 : vector<2x32xf32>
    %104 = arith.addf %94, %99 : vector<2x32xf32>
    %105 = arith.negf %104 : vector<2x32xf32>
    %106 = math.exp %105 : vector<2x32xf32>
    %cst_49 = arith.constant 1.000000e+00 : f32
    %107 = vector.broadcast %cst_49 : f32 to vector<2x32xf32>
    %108 = arith.addf %107, %106 : vector<2x32xf32>
    %109 = arith.divf %107, %108 : vector<2x32xf32>
    %110 = arith.addf %96, %100 : vector<2x32xf32>
    %111 = arith.negf %110 : vector<2x32xf32>
    %112 = math.exp %111 : vector<2x32xf32>
    %cst_50 = arith.constant 1.000000e+00 : f32
    %113 = vector.broadcast %cst_50 : f32 to vector<2x32xf32>
    %114 = arith.addf %113, %112 : vector<2x32xf32>
    %115 = arith.divf %113, %114 : vector<2x32xf32>
    %116 = arith.mulf %109, %103 : vector<2x32xf32>
    %117 = arith.addf %98, %116 : vector<2x32xf32>
    %118 = math.tanh %117 : vector<2x32xf32>
    %cst_51 = arith.constant 1.000000e+00 : f32
    %119 = vector.broadcast %cst_51 : f32 to vector<2x32xf32>
    %120 = arith.subf %119, %115 : vector<2x32xf32>
    %121 = arith.mulf %120, %118 : vector<2x32xf32>
    %122 = arith.mulf %115, %91 : vector<2x32xf32>
    %123 = arith.addf %121, %122 : vector<2x32xf32>
    %124 = vector.broadcast %c2_i32_41 : i32 to vector<2x1xi32>
    %125 = arith.cmpi slt, %124, %16 : vector<2x1xi32>
    %126 = vector.shape_cast %125 : vector<2x1xi1> to vector<2x1xi1>
    %127 = vector.broadcast %126 : vector<2x1xi1> to vector<2x32xi1>
    %128 = arith.select %127, %123, %91 : vector<2x32xi1>, vector<2x32xf32>
    %c3_i32 = arith.constant 3 : i32
    %c2_i32_52 = arith.constant 2 : i32
    %129 = arith.muli %c3_i32, %c2_i32_52 : i32
    %130 = arith.index_cast %129 : i32 to index
    %c0_53 = arith.constant 0 : index
    %131 = vector.load %arg9[%130, %c0_53] : memref<16x32xf32, #tpu.memory_space<vmem>>, vector<2x32xf32>
    %132 = arith.index_cast %129 : i32 to index
    %c0_54 = arith.constant 0 : index
    %133 = vector.load %arg10[%132, %c0_54] : memref<16x32xf32, #tpu.memory_space<vmem>>, vector<2x32xf32>
    %134 = arith.index_cast %129 : i32 to index
    %c0_55 = arith.constant 0 : index
    %135 = vector.load %arg11[%134, %c0_55] : memref<16x32xf32, #tpu.memory_space<vmem>>, vector<2x32xf32>
    %cst_56 = arith.constant dense<0.000000e+00> : vector<2x32xf32>
    %136 = tpu.matmul %128, %12, %cst_56 {dimension_numbers = #tpu.dot_dimension_numbers<[1], [0], [0], [1], [0, 0, 1, 1], [], []>} : vector<2x32xf32>, vector<32x32xf32>, vector<2x32xf32> -> vector<2x32xf32>
    %cst_57 = arith.constant dense<0.000000e+00> : vector<2x32xf32>
    %137 = tpu.matmul %128, %13, %cst_57 {dimension_numbers = #tpu.dot_dimension_numbers<[1], [0], [0], [1], [0, 0, 1, 1], [], []>} : vector<2x32xf32>, vector<32x32xf32>, vector<2x32xf32> -> vector<2x32xf32>
    %cst_58 = arith.constant dense<0.000000e+00> : vector<2x32xf32>
    %138 = tpu.matmul %128, %14, %cst_58 {dimension_numbers = #tpu.dot_dimension_numbers<[1], [0], [0], [1], [0, 0, 1, 1], [], []>} : vector<2x32xf32>, vector<32x32xf32>, vector<2x32xf32> -> vector<2x32xf32>
    %139 = vector.broadcast %15 : vector<1x32xf32> to vector<2x32xf32>
    %140 = arith.addf %138, %139 : vector<2x32xf32>
    %141 = arith.addf %131, %136 : vector<2x32xf32>
    %142 = arith.negf %141 : vector<2x32xf32>
    %143 = math.exp %142 : vector<2x32xf32>
    %cst_59 = arith.constant 1.000000e+00 : f32
    %144 = vector.broadcast %cst_59 : f32 to vector<2x32xf32>
    %145 = arith.addf %144, %143 : vector<2x32xf32>
    %146 = arith.divf %144, %145 : vector<2x32xf32>
    %147 = arith.addf %133, %137 : vector<2x32xf32>
    %148 = arith.negf %147 : vector<2x32xf32>
    %149 = math.exp %148 : vector<2x32xf32>
    %cst_60 = arith.constant 1.000000e+00 : f32
    %150 = vector.broadcast %cst_60 : f32 to vector<2x32xf32>
    %151 = arith.addf %150, %149 : vector<2x32xf32>
    %152 = arith.divf %150, %151 : vector<2x32xf32>
    %153 = arith.mulf %146, %140 : vector<2x32xf32>
    %154 = arith.addf %135, %153 : vector<2x32xf32>
    %155 = math.tanh %154 : vector<2x32xf32>
    %cst_61 = arith.constant 1.000000e+00 : f32
    %156 = vector.broadcast %cst_61 : f32 to vector<2x32xf32>
    %157 = arith.subf %156, %152 : vector<2x32xf32>
    %158 = arith.mulf %157, %155 : vector<2x32xf32>
    %159 = arith.mulf %152, %128 : vector<2x32xf32>
    %160 = arith.addf %158, %159 : vector<2x32xf32>
    %161 = vector.broadcast %c3_i32 : i32 to vector<2x1xi32>
    %162 = arith.cmpi slt, %161, %16 : vector<2x1xi32>
    %163 = vector.shape_cast %162 : vector<2x1xi1> to vector<2x1xi1>
    %164 = vector.broadcast %163 : vector<2x1xi1> to vector<2x32xi1>
    %165 = arith.select %164, %160, %128 : vector<2x32xi1>, vector<2x32xf32>
    %c4_i32 = arith.constant 4 : i32
    %c2_i32_62 = arith.constant 2 : i32
    %166 = arith.muli %c4_i32, %c2_i32_62 : i32
    %167 = arith.index_cast %166 : i32 to index
    %c0_63 = arith.constant 0 : index
    %168 = vector.load %arg9[%167, %c0_63] : memref<16x32xf32, #tpu.memory_space<vmem>>, vector<2x32xf32>
    %169 = arith.index_cast %166 : i32 to index
    %c0_64 = arith.constant 0 : index
    %170 = vector.load %arg10[%169, %c0_64] : memref<16x32xf32, #tpu.memory_space<vmem>>, vector<2x32xf32>
    %171 = arith.index_cast %166 : i32 to index
    %c0_65 = arith.constant 0 : index
    %172 = vector.load %arg11[%171, %c0_65] : memref<16x32xf32, #tpu.memory_space<vmem>>, vector<2x32xf32>
    %cst_66 = arith.constant dense<0.000000e+00> : vector<2x32xf32>
    %173 = tpu.matmul %165, %12, %cst_66 {dimension_numbers = #tpu.dot_dimension_numbers<[1], [0], [0], [1], [0, 0, 1, 1], [], []>} : vector<2x32xf32>, vector<32x32xf32>, vector<2x32xf32> -> vector<2x32xf32>
    %cst_67 = arith.constant dense<0.000000e+00> : vector<2x32xf32>
    %174 = tpu.matmul %165, %13, %cst_67 {dimension_numbers = #tpu.dot_dimension_numbers<[1], [0], [0], [1], [0, 0, 1, 1], [], []>} : vector<2x32xf32>, vector<32x32xf32>, vector<2x32xf32> -> vector<2x32xf32>
    %cst_68 = arith.constant dense<0.000000e+00> : vector<2x32xf32>
    %175 = tpu.matmul %165, %14, %cst_68 {dimension_numbers = #tpu.dot_dimension_numbers<[1], [0], [0], [1], [0, 0, 1, 1], [], []>} : vector<2x32xf32>, vector<32x32xf32>, vector<2x32xf32> -> vector<2x32xf32>
    %176 = vector.broadcast %15 : vector<1x32xf32> to vector<2x32xf32>
    %177 = arith.addf %175, %176 : vector<2x32xf32>
    %178 = arith.addf %168, %173 : vector<2x32xf32>
    %179 = arith.negf %178 : vector<2x32xf32>
    %180 = math.exp %179 : vector<2x32xf32>
    %cst_69 = arith.constant 1.000000e+00 : f32
    %181 = vector.broadcast %cst_69 : f32 to vector<2x32xf32>
    %182 = arith.addf %181, %180 : vector<2x32xf32>
    %183 = arith.divf %181, %182 : vector<2x32xf32>
    %184 = arith.addf %170, %174 : vector<2x32xf32>
    %185 = arith.negf %184 : vector<2x32xf32>
    %186 = math.exp %185 : vector<2x32xf32>
    %cst_70 = arith.constant 1.000000e+00 : f32
    %187 = vector.broadcast %cst_70 : f32 to vector<2x32xf32>
    %188 = arith.addf %187, %186 : vector<2x32xf32>
    %189 = arith.divf %187, %188 : vector<2x32xf32>
    %190 = arith.mulf %183, %177 : vector<2x32xf32>
    %191 = arith.addf %172, %190 : vector<2x32xf32>
    %192 = math.tanh %191 : vector<2x32xf32>
    %cst_71 = arith.constant 1.000000e+00 : f32
    %193 = vector.broadcast %cst_71 : f32 to vector<2x32xf32>
    %194 = arith.subf %193, %189 : vector<2x32xf32>
    %195 = arith.mulf %194, %192 : vector<2x32xf32>
    %196 = arith.mulf %189, %165 : vector<2x32xf32>
    %197 = arith.addf %195, %196 : vector<2x32xf32>
    %198 = vector.broadcast %c4_i32 : i32 to vector<2x1xi32>
    %199 = arith.cmpi slt, %198, %16 : vector<2x1xi32>
    %200 = vector.shape_cast %199 : vector<2x1xi1> to vector<2x1xi1>
    %201 = vector.broadcast %200 : vector<2x1xi1> to vector<2x32xi1>
    %202 = arith.select %201, %197, %165 : vector<2x32xi1>, vector<2x32xf32>
    %c5_i32 = arith.constant 5 : i32
    %c2_i32_72 = arith.constant 2 : i32
    %203 = arith.muli %c5_i32, %c2_i32_72 : i32
    %204 = arith.index_cast %203 : i32 to index
    %c0_73 = arith.constant 0 : index
    %205 = vector.load %arg9[%204, %c0_73] : memref<16x32xf32, #tpu.memory_space<vmem>>, vector<2x32xf32>
    %206 = arith.index_cast %203 : i32 to index
    %c0_74 = arith.constant 0 : index
    %207 = vector.load %arg10[%206, %c0_74] : memref<16x32xf32, #tpu.memory_space<vmem>>, vector<2x32xf32>
    %208 = arith.index_cast %203 : i32 to index
    %c0_75 = arith.constant 0 : index
    %209 = vector.load %arg11[%208, %c0_75] : memref<16x32xf32, #tpu.memory_space<vmem>>, vector<2x32xf32>
    %cst_76 = arith.constant dense<0.000000e+00> : vector<2x32xf32>
    %210 = tpu.matmul %202, %12, %cst_76 {dimension_numbers = #tpu.dot_dimension_numbers<[1], [0], [0], [1], [0, 0, 1, 1], [], []>} : vector<2x32xf32>, vector<32x32xf32>, vector<2x32xf32> -> vector<2x32xf32>
    %cst_77 = arith.constant dense<0.000000e+00> : vector<2x32xf32>
    %211 = tpu.matmul %202, %13, %cst_77 {dimension_numbers = #tpu.dot_dimension_numbers<[1], [0], [0], [1], [0, 0, 1, 1], [], []>} : vector<2x32xf32>, vector<32x32xf32>, vector<2x32xf32> -> vector<2x32xf32>
    %cst_78 = arith.constant dense<0.000000e+00> : vector<2x32xf32>
    %212 = tpu.matmul %202, %14, %cst_78 {dimension_numbers = #tpu.dot_dimension_numbers<[1], [0], [0], [1], [0, 0, 1, 1], [], []>} : vector<2x32xf32>, vector<32x32xf32>, vector<2x32xf32> -> vector<2x32xf32>
    %213 = vector.broadcast %15 : vector<1x32xf32> to vector<2x32xf32>
    %214 = arith.addf %212, %213 : vector<2x32xf32>
    %215 = arith.addf %205, %210 : vector<2x32xf32>
    %216 = arith.negf %215 : vector<2x32xf32>
    %217 = math.exp %216 : vector<2x32xf32>
    %cst_79 = arith.constant 1.000000e+00 : f32
    %218 = vector.broadcast %cst_79 : f32 to vector<2x32xf32>
    %219 = arith.addf %218, %217 : vector<2x32xf32>
    %220 = arith.divf %218, %219 : vector<2x32xf32>
    %221 = arith.addf %207, %211 : vector<2x32xf32>
    %222 = arith.negf %221 : vector<2x32xf32>
    %223 = math.exp %222 : vector<2x32xf32>
    %cst_80 = arith.constant 1.000000e+00 : f32
    %224 = vector.broadcast %cst_80 : f32 to vector<2x32xf32>
    %225 = arith.addf %224, %223 : vector<2x32xf32>
    %226 = arith.divf %224, %225 : vector<2x32xf32>
    %227 = arith.mulf %220, %214 : vector<2x32xf32>
    %228 = arith.addf %209, %227 : vector<2x32xf32>
    %229 = math.tanh %228 : vector<2x32xf32>
    %cst_81 = arith.constant 1.000000e+00 : f32
    %230 = vector.broadcast %cst_81 : f32 to vector<2x32xf32>
    %231 = arith.subf %230, %226 : vector<2x32xf32>
    %232 = arith.mulf %231, %229 : vector<2x32xf32>
    %233 = arith.mulf %226, %202 : vector<2x32xf32>
    %234 = arith.addf %232, %233 : vector<2x32xf32>
    %235 = vector.broadcast %c5_i32 : i32 to vector<2x1xi32>
    %236 = arith.cmpi slt, %235, %16 : vector<2x1xi32>
    %237 = vector.shape_cast %236 : vector<2x1xi1> to vector<2x1xi1>
    %238 = vector.broadcast %237 : vector<2x1xi1> to vector<2x32xi1>
    %239 = arith.select %238, %234, %202 : vector<2x32xi1>, vector<2x32xf32>
    %c6_i32 = arith.constant 6 : i32
    %c2_i32_82 = arith.constant 2 : i32
    %240 = arith.muli %c6_i32, %c2_i32_82 : i32
    %241 = arith.index_cast %240 : i32 to index
    %c0_83 = arith.constant 0 : index
    %242 = vector.load %arg9[%241, %c0_83] : memref<16x32xf32, #tpu.memory_space<vmem>>, vector<2x32xf32>
    %243 = arith.index_cast %240 : i32 to index
    %c0_84 = arith.constant 0 : index
    %244 = vector.load %arg10[%243, %c0_84] : memref<16x32xf32, #tpu.memory_space<vmem>>, vector<2x32xf32>
    %245 = arith.index_cast %240 : i32 to index
    %c0_85 = arith.constant 0 : index
    %246 = vector.load %arg11[%245, %c0_85] : memref<16x32xf32, #tpu.memory_space<vmem>>, vector<2x32xf32>
    %cst_86 = arith.constant dense<0.000000e+00> : vector<2x32xf32>
    %247 = tpu.matmul %239, %12, %cst_86 {dimension_numbers = #tpu.dot_dimension_numbers<[1], [0], [0], [1], [0, 0, 1, 1], [], []>} : vector<2x32xf32>, vector<32x32xf32>, vector<2x32xf32> -> vector<2x32xf32>
    %cst_87 = arith.constant dense<0.000000e+00> : vector<2x32xf32>
    %248 = tpu.matmul %239, %13, %cst_87 {dimension_numbers = #tpu.dot_dimension_numbers<[1], [0], [0], [1], [0, 0, 1, 1], [], []>} : vector<2x32xf32>, vector<32x32xf32>, vector<2x32xf32> -> vector<2x32xf32>
    %cst_88 = arith.constant dense<0.000000e+00> : vector<2x32xf32>
    %249 = tpu.matmul %239, %14, %cst_88 {dimension_numbers = #tpu.dot_dimension_numbers<[1], [0], [0], [1], [0, 0, 1, 1], [], []>} : vector<2x32xf32>, vector<32x32xf32>, vector<2x32xf32> -> vector<2x32xf32>
    %250 = vector.broadcast %15 : vector<1x32xf32> to vector<2x32xf32>
    %251 = arith.addf %249, %250 : vector<2x32xf32>
    %252 = arith.addf %242, %247 : vector<2x32xf32>
    %253 = arith.negf %252 : vector<2x32xf32>
    %254 = math.exp %253 : vector<2x32xf32>
    %cst_89 = arith.constant 1.000000e+00 : f32
    %255 = vector.broadcast %cst_89 : f32 to vector<2x32xf32>
    %256 = arith.addf %255, %254 : vector<2x32xf32>
    %257 = arith.divf %255, %256 : vector<2x32xf32>
    %258 = arith.addf %244, %248 : vector<2x32xf32>
    %259 = arith.negf %258 : vector<2x32xf32>
    %260 = math.exp %259 : vector<2x32xf32>
    %cst_90 = arith.constant 1.000000e+00 : f32
    %261 = vector.broadcast %cst_90 : f32 to vector<2x32xf32>
    %262 = arith.addf %261, %260 : vector<2x32xf32>
    %263 = arith.divf %261, %262 : vector<2x32xf32>
    %264 = arith.mulf %257, %251 : vector<2x32xf32>
    %265 = arith.addf %246, %264 : vector<2x32xf32>
    %266 = math.tanh %265 : vector<2x32xf32>
    %cst_91 = arith.constant 1.000000e+00 : f32
    %267 = vector.broadcast %cst_91 : f32 to vector<2x32xf32>
    %268 = arith.subf %267, %263 : vector<2x32xf32>
    %269 = arith.mulf %268, %266 : vector<2x32xf32>
    %270 = arith.mulf %263, %239 : vector<2x32xf32>
    %271 = arith.addf %269, %270 : vector<2x32xf32>
    %272 = vector.broadcast %c6_i32 : i32 to vector<2x1xi32>
    %273 = arith.cmpi slt, %272, %16 : vector<2x1xi32>
    %274 = vector.shape_cast %273 : vector<2x1xi1> to vector<2x1xi1>
    %275 = vector.broadcast %274 : vector<2x1xi1> to vector<2x32xi1>
    %276 = arith.select %275, %271, %239 : vector<2x32xi1>, vector<2x32xf32>
    %c7_i32 = arith.constant 7 : i32
    %c2_i32_92 = arith.constant 2 : i32
    %277 = arith.muli %c7_i32, %c2_i32_92 : i32
    %278 = arith.index_cast %277 : i32 to index
    %c0_93 = arith.constant 0 : index
    %279 = vector.load %arg9[%278, %c0_93] : memref<16x32xf32, #tpu.memory_space<vmem>>, vector<2x32xf32>
    %280 = arith.index_cast %277 : i32 to index
    %c0_94 = arith.constant 0 : index
    %281 = vector.load %arg10[%280, %c0_94] : memref<16x32xf32, #tpu.memory_space<vmem>>, vector<2x32xf32>
    %282 = arith.index_cast %277 : i32 to index
    %c0_95 = arith.constant 0 : index
    %283 = vector.load %arg11[%282, %c0_95] : memref<16x32xf32, #tpu.memory_space<vmem>>, vector<2x32xf32>
    %cst_96 = arith.constant dense<0.000000e+00> : vector<2x32xf32>
    %284 = tpu.matmul %276, %12, %cst_96 {dimension_numbers = #tpu.dot_dimension_numbers<[1], [0], [0], [1], [0, 0, 1, 1], [], []>} : vector<2x32xf32>, vector<32x32xf32>, vector<2x32xf32> -> vector<2x32xf32>
    %cst_97 = arith.constant dense<0.000000e+00> : vector<2x32xf32>
    %285 = tpu.matmul %276, %13, %cst_97 {dimension_numbers = #tpu.dot_dimension_numbers<[1], [0], [0], [1], [0, 0, 1, 1], [], []>} : vector<2x32xf32>, vector<32x32xf32>, vector<2x32xf32> -> vector<2x32xf32>
    %cst_98 = arith.constant dense<0.000000e+00> : vector<2x32xf32>
    %286 = tpu.matmul %276, %14, %cst_98 {dimension_numbers = #tpu.dot_dimension_numbers<[1], [0], [0], [1], [0, 0, 1, 1], [], []>} : vector<2x32xf32>, vector<32x32xf32>, vector<2x32xf32> -> vector<2x32xf32>
    %287 = vector.broadcast %15 : vector<1x32xf32> to vector<2x32xf32>
    %288 = arith.addf %286, %287 : vector<2x32xf32>
    %289 = arith.addf %279, %284 : vector<2x32xf32>
    %290 = arith.negf %289 : vector<2x32xf32>
    %291 = math.exp %290 : vector<2x32xf32>
    %cst_99 = arith.constant 1.000000e+00 : f32
    %292 = vector.broadcast %cst_99 : f32 to vector<2x32xf32>
    %293 = arith.addf %292, %291 : vector<2x32xf32>
    %294 = arith.divf %292, %293 : vector<2x32xf32>
    %295 = arith.addf %281, %285 : vector<2x32xf32>
    %296 = arith.negf %295 : vector<2x32xf32>
    %297 = math.exp %296 : vector<2x32xf32>
    %cst_100 = arith.constant 1.000000e+00 : f32
    %298 = vector.broadcast %cst_100 : f32 to vector<2x32xf32>
    %299 = arith.addf %298, %297 : vector<2x32xf32>
    %300 = arith.divf %298, %299 : vector<2x32xf32>
    %301 = arith.mulf %294, %288 : vector<2x32xf32>
    %302 = arith.addf %283, %301 : vector<2x32xf32>
    %303 = math.tanh %302 : vector<2x32xf32>
    %cst_101 = arith.constant 1.000000e+00 : f32
    %304 = vector.broadcast %cst_101 : f32 to vector<2x32xf32>
    %305 = arith.subf %304, %300 : vector<2x32xf32>
    %306 = arith.mulf %305, %303 : vector<2x32xf32>
    %307 = arith.mulf %300, %276 : vector<2x32xf32>
    %308 = arith.addf %306, %307 : vector<2x32xf32>
    %309 = vector.broadcast %c7_i32 : i32 to vector<2x1xi32>
    %310 = arith.cmpi slt, %309, %16 : vector<2x1xi32>
    %311 = vector.shape_cast %310 : vector<2x1xi1> to vector<2x1xi1>
    %312 = vector.broadcast %311 : vector<2x1xi1> to vector<2x32xi1>
    %313 = arith.select %312, %308, %276 : vector<2x32xi1>, vector<2x32xf32>
    %c8_i32 = arith.constant 8 : i32
    %c0_102 = arith.constant 0 : index
    %c0_103 = arith.constant 0 : index
    %314 = vector.load %arg8[%c0_102, %c0_103] : memref<2x32xf32, #tpu.memory_space<vmem>>, vector<2x32xf32>
    tpu.vector_store %arg8[%c0_102, %c0_103], %313 {strides = array<i32>} : memref<2x32xf32, #tpu.memory_space<vmem>>, vector<2x32xf32>,
    return
  }
}

</mosaic_0001>

<llo_original>
// kernel: _dip_forward_impl.1
$region0: #{_dip_forward_impl.1}
  #allocation0 [shape = 'u32[]', space=smem, size = 0x4, offset = 0x4, fixed_abs, tag = 'smem constant byte address 0x4 - core index']
  #allocation1 [shape = 'u32[144,128]{1,0:T(1,128)}', space=vmem, size = 0x12000, scoped, tag = 'internal scratch']
  #allocation2 [shape = 'f32[16,32]{1,0:T(8,128)}', space=vmem, size = 0x2000, scoped, tag = 'scratch operand']
  #allocation3 [shape = 'f32[16,32]{1,0:T(8,128)}', space=vmem, size = 0x2000, scoped, tag = 'scratch operand']
  #allocation4 [shape = 'f32[16,32]{1,0:T(8,128)}', space=vmem, size = 0x2000, scoped, tag = 'scratch operand']
  %s0 = inlined_call_operand.vmem [shape: s32[2,1], index: 0, kind: input, shape index: {}]
  %s1 = inlined_call_operand.vmem [shape: f32[16,32], index: 1, kind: input, shape index: {}]
  %s2 = inlined_call_operand.vmem [shape: f32[32,96], index: 2, kind: input, shape index: {}]
  %s3 = inlined_call_operand.hbm [shape: f32[32,32], index: 3, kind: input, shape index: {}]
  %s4 = inlined_call_operand.hbm [shape: f32[32,32], index: 4, kind: input, shape index: {}]
  %s5 = inlined_call_operand.vmem [shape: f32[32,32], index: 5, kind: input, shape index: {}]
  %s6 = inlined_call_operand.vmem [shape: f32[1,96], index: 6, kind: input, shape index: {}]
  %s7 = inlined_call_operand.vmem [shape: f32[1,32], index: 7, kind: input, shape index: {}]
  %s8 = inlined_call_operand.hbm [shape: f32[2,32], index: 8, kind: output, shape index: {}]
  %s9 = sld [smem:[#allocation0]]
  $region50: #{_dip_forward_impl.1} parent=0
    _
  %s11 = ssub.s32 1, %s9
  %s12 = scalar_select 0, %s11, %s9
  $region1: #{_dip_forward_impl.1} parent=0
    #allocation5 [shape = 'u8[16384]{0}', space=vmem, size = 0x4000, scoped, tag = 'input window, operand 3, single buffered']
    #allocation6 [shape = 's32[1]{0}', space=sflag, size = 0x4, scoped, tag = 'scoped memory for _dip_forward_impl.1']
    #allocation7 [shape = 's32[1]{0}', space=sflag, size = 0x4, scoped, tag = 'scoped memory for _dip_forward_impl.1']
    #allocation8 [shape = 'u8[16384]{0}', space=vmem, size = 0x4000, scoped, tag = 'input window, operand 4, single buffered']
    #allocation9 [shape = 's32[1]{0}', space=sflag, size = 0x4, scoped, tag = 'scoped memory for _dip_forward_impl.1']
    #allocation10 [shape = 'u8[1024]{0}', space=vmem, size = 0x400, scoped, tag = 'output window, operand 0, single buffered']
    %13 = vsyncpa [#allocation6], 0
    %14 = vsyncpa [#allocation9], 0
    %15 = vsyncpa [#allocation7], 0
    // Predicated region
    $region2: #{_dip_forward_impl.1} parent=1 // pred_check
      _
    $region3: #{_dip_forward_impl.1} parent=1 // pred_check_branch
      %17 = sbr.rel (0) target = $region5
    $region4: #{_dip_forward_impl.1} parent=1 // pred_region
      _
    $region5: #{_dip_forward_impl.1} parent=1 // pred_fallthru
      _
    // Predicated region
    $region6: #{_dip_forward_impl.1} parent=1 // pred_check
      _
    $region7: #{_dip_forward_impl.1} parent=1 // pred_check_branch
      %19 = sbr.rel (0) target = $region9
    $region8: #{_dip_forward_impl.1} parent=1 // pred_region
      _
    $region9: #{_dip_forward_impl.1} parent=1 // pred_fallthru
      _
    // Predicated region
    $region10: #{_dip_forward_impl.1} parent=1 // pred_check
      _
    $region11: #{_dip_forward_impl.1} parent=1 // pred_check_branch
      %21 = sbr.rel (0) target = $region13
    $region12: #{_dip_forward_impl.1} parent=1 // pred_region
      _
    $region13: #{_dip_forward_impl.1} parent=1 // pred_fallthru
      _
    // Predicated region
    $region14: #{_dip_forward_impl.1} parent=1 // pred_check
      _
    $region15: #{_dip_forward_impl.1} parent=1 // pred_check_branch
      %23 = sbr.rel (0) target = $region17
    $region16: #{_dip_forward_impl.1} parent=1 // pred_region
      %s25 = ssub.s32 512, 512
      %26 = vsyncadd [#allocation6], %s25
      %s27 = sshll.u32 [#allocation5], 4
      %s28 = int_to_ptr.vmem [resolvable:$true] %s27
      %33 = dma.hbm_to_vmem [thread:$0]  %s3, 512, %s28, [#allocation6], 128, 128, 8
    $region17: #{_dip_forward_impl.1} parent=1 // pred_fallthru
      _
    // Predicated region
    $region18: #{_dip_forward_impl.1} parent=1 // pred_check
      _
    $region19: #{_dip_forward_impl.1} parent=1 // pred_check_branch
      %35 = sbr.rel (0) target = $region21
    $region20: #{_dip_forward_impl.1} parent=1 // pred_region
      %s37 = ssub.s32 512, 512
      %38 = vsyncadd [#allocation9], %s37
      %s39 = sshll.u32 [#allocation8], 4
      %s40 = int_to_ptr.vmem [resolvable:$true] %s39
      %45 = dma.hbm_to_vmem [thread:$0]  %s4, 512, %s40, [#allocation9], 128, 128, 8
    $region21: #{_dip_forward_impl.1} parent=1 // pred_fallthru
      _
    // Predicated region
    $region22: #{_dip_forward_impl.1} parent=1 // pred_check
      _
    $region23: #{_dip_forward_impl.1} parent=1 // pred_check_branch
      %47 = sbr.rel (0) target = $region25
    $region24: #{_dip_forward_impl.1} parent=1 // pred_region
      _
    $region25: #{_dip_forward_impl.1} parent=1 // pred_fallthru
      _
    // Predicated region
    $region26: #{_dip_forward_impl.1} parent=1 // pred_check
      _
    $region27: #{_dip_forward_impl.1} parent=1 // pred_check_branch
      %49 = sbr.rel (0) target = $region29
    $region28: #{_dip_forward_impl.1} parent=1 // pred_region
      _
    $region29: #{_dip_forward_impl.1} parent=1 // pred_fallthru
      _
    // Predicated region
    $region30: #{_dip_forward_impl.1} parent=1 // pred_check
      _
    $region31: #{_dip_forward_impl.1} parent=1 // pred_check_branch
      %51 = sbr.rel (0) target = $region33
    $region32: #{_dip_forward_impl.1} parent=1 // pred_region
      _
    $region33: #{_dip_forward_impl.1} parent=1 // pred_fallthru
      _
    // Predicated region
    $region34: #{_dip_forward_impl.1} parent=1 // pred_check
      _
    $region35: #{_dip_forward_impl.1} parent=1 // pred_check_branch
      %53 = sbr.rel (0) target = $region37
    $region36: #{_dip_forward_impl.1} parent=1 // pred_region
      %54 = dma.done [#allocation6], 512
    $region37: #{_dip_forward_impl.1} parent=1 // pred_fallthru
      _
    // Predicated region
    $region38: #{_dip_forward_impl.1} parent=1 // pred_check
      _
    $region39: #{_dip_forward_impl.1} parent=1 // pred_check_branch
      %56 = sbr.rel (0) target = $region41
    $region40: #{_dip_forward_impl.1} parent=1 // pred_region
      %57 = dma.done [#allocation9], 512
    $region41: #{_dip_forward_impl.1} parent=1 // pred_fallthru
      _
    %v58 = vld [vmem:[%s1] sm:$0xff]
    %v59 = vld [vmem:[%s1 + $0x8] sm:$0xff]
    %v60 = vld [vmem:[%s2] sm:$0xff]
    %v61 = vld [vmem:[%s2 + $0x8] sm:$0xff]
    %v62 = vld [vmem:[%s2 + $0x10] sm:$0xff]
    %v63 = vld [vmem:[%s2 + $0x18] sm:$0xff]
    %v64 = vld [vmem:[%s6] sm:$0x1]
    %v66 = vlaneseq
    %v67 = vshrl.u32 %v66, 7
    %v68 = vsub.s32 0, %v67
    %v69 = vrot.slane %v64, %v68
    %vm71 = vcmask 261120
    %v73 = vsel %vm71, %v58, 0
    %v76 = vsel %vm71, %v59, 0
    %78 = vmatprep.subr.mxu0 0.0
    %79 = vmatpush1.msra.mxu0 %v60
    %80 = vmatprep.subr.mxu0 0.0
    %81 = vmatpush1.msra.mxu0 %v61
    %82 = vmatprep.subr.mxu0 0.0
    %83 = vmatpush1.msra.mxu0 %v62
    %84 = vmatprep.subr.mxu0 0.0
    %85 = vmatpush1.msra.mxu0 %v63
    %86 = vmatprep.subr.mxu0 0.0
    %87 = vmatpush1.msra.mxu0 0.0
    %88 = vmatprep.subr.mxu0 0.0
    %89 = vmatpush1.msra.mxu0 0.0
    %90 = vmatprep.subr.mxu0 0.0
    %91 = vmatpush1.msra.mxu0 0.0
    %92 = vmatprep.subr.mxu0 0.0
    %93 = vmatpush1.msra.mxu0 0.0
    %94 = vmatprep.subr.mxu0 0.0
    %95 = vmatpush1.msra.mxu0 0.0
    %96 = vmatprep.subr.mxu0 0.0
    %97 = vmatpush1.msra.mxu0 0.0
    %98 = vmatprep.subr.mxu0 0.0
    %99 = vmatpush1.msra.mxu0 0.0
    %100 = vmatprep.subr.mxu0 0.0
    %101 = vmatpush1.msra.mxu0 0.0
    %102 = vmatprep.subr.mxu0 0.0
    %103 = vmatpush1.msra.mxu0 0.0
    %104 = vmatprep.subr.mxu0 0.0
    %105 = vmatpush1.msra.mxu0 0.0
    %106 = vmatprep.subr.mxu0 0.0
    %107 = vmatpush1.msra.mxu0 0.0
    %108 = vmatprep.subr.mxu0 0.0
    %109 = vmatpush1.msra.mxu0 0.0
    %110 = vmatprep.subr.mxu0 0.0
    %111 = vmatpush1.msra.mxu0 0.0
    %112 = vmatprep.subr.mxu0 0.0
    %113 = vmatpush1.msra.mxu0 0.0
    %114 = vmatprep.subr.mxu0 0.0
    %115 = vmatpush1.msra.mxu0 0.0
    %116 = vmatprep.subr.mxu0 0.0
    %117 = vmatpush1.msra.mxu0 0.0
    %118 = vmatprep.subr.mxu0 0.0
    %119 = vmatpush1.msra.mxu0 0.0
    %120 = vmatprep.subr.mxu0 0.0
    %121 = vmatpush1.msra.mxu0 0.0
    %122 = vmatprep.subr.mxu0 0.0
    %123 = vmatpush1.msra.mxu0 0.0
    %124 = vmatprep.subr.mxu0 0.0
    %125 = vmatpush1.msra.mxu0 0.0
    %126 = vmatprep.subr.mxu0 0.0
    %127 = vmatpush1.msra.mxu0 0.0
    %128 = vmatprep.subr.mxu0 0.0
    %129 = vmatpush1.msra.mxu0 0.0
    %130 = vmatprep.subr.mxu0 0.0
    %131 = vmatpush1.msra.mxu0 0.0
    %132 = vmatprep.subr.mxu0 0.0
    %133 = vmatpush1.msra.mxu0 0.0
    %134 = vmatprep.subr.mxu0 0.0
    %135 = vmatpush1.msra.mxu0 0.0
    %136 = vmatprep.subr.mxu0 0.0
    %137 = vmatpush1.msra.mxu0 0.0
    %138 = vmatprep.subr.mxu0 0.0
    %139 = vmatpush1.msra.mxu0 0.0
    %140 = vmatprep.subr.mxu0 0.0
    %141 = vmatpush1.msra.mxu0 0.0
    %142 = vmatprep.mubr.f32.mxu0 0.0
    %143 = vmatmul.mubr.f32.gmra.mrb[0].mxu0 %v73
    %v144 = vpop.f32.mrb[0].mxu0
    %v145 = vadd.f32 %v69, %v144
    %v146 = vpop.f32.mrb[0].mxu0
    %147 = vmatprep.mubr.f32.mxu0 0.0
    %148 = vmatmul.mubr.f32.gmra.mrb[0].mxu0 %v76
    %v149 = vpop.f32.mrb[0].mxu0
    %v150 = vadd.f32 %v69, %v149
    %v151 = vpop.f32.mrb[0].mxu0
    %152 = vdwg.mxu0
    %153 = vst.msk [vmem:[#allocation2] sm:$0xff] %vm71, %v145
    %154 = vst.msk [vmem:[#allocation2 + $0x8] sm:$0xff] %vm71, %v150
    %157 = vrot.lane.b32.xlu0 %v145, 96
    %v158 = vpop.permute.xlu0 %157
    %159 = vrot.lane.b32.xlu0 %v150, 96
    %v160 = vpop.permute.xlu0 %159
    %163 = vst.msk [vmem:[#allocation3] sm:$0xff] %vm71, %v158
    %164 = vst.msk [vmem:[#allocation3 + $0x8] sm:$0xff] %vm71, %v160
    %165 = vrot.lane.b32.xlu0 %v145, 64
    %v166 = vpop.permute.xlu0 %165
    %167 = vrot.lane.b32.xlu0 %v150, 64
    %v168 = vpop.permute.xlu0 %167
    %171 = vst.msk [vmem:[#allocation4] sm:$0xff] %vm71, %v166
    %172 = vst.msk [vmem:[#allocation4 + $0x8] sm:$0xff] %vm71, %v168
    %v173 = vld [vmem:[#allocation5] sm:$0xff]
    %v174 = vld [vmem:[#allocation5 + $0x8] sm:$0xff]
    %v175 = vld [vmem:[#allocation5 + $0x10] sm:$0xff]
    %v176 = vld [vmem:[#allocation5 + $0x18] sm:$0xff]
    %v177 = vld [vmem:[#allocation8] sm:$0xff]
    %v178 = vld [vmem:[#allocation8 + $0x8] sm:$0xff]
    %v179 = vld [vmem:[#allocation8 + $0x10] sm:$0xff]
    %v180 = vld [vmem:[#allocation8 + $0x18] sm:$0xff]
    %v181 = vld [vmem:[%s5] sm:$0xff]
    %v182 = vld [vmem:[%s5 + $0x8] sm:$0xff]
    %v183 = vld [vmem:[%s5 + $0x10] sm:$0xff]
    %v184 = vld [vmem:[%s5 + $0x18] sm:$0xff]
    %v185 = vld [vmem:[%s7] sm:$0x1]
    %v186 = vld [vmem:[%s0] sm:$0x3]
    %v187 = vld [vmem:[#allocation2] sm:$0x3]
    %v188 = vld [vmem:[#allocation3] sm:$0x3]
    %v189 = vld [vmem:[#allocation4] sm:$0x3]
    %v191 = vsel %vm71, 0.0, 0
    %193 = vmatprep.subr.mxu0 0.0
    %194 = vmatpush1.msra.mxu0 %v173
    %195 = vmatprep.subr.mxu0 0.0
    %196 = vmatpush1.msra.mxu0 %v174
    %197 = vmatprep.subr.mxu0 0.0
    %198 = vmatpush1.msra.mxu0 %v175
    %199 = vmatprep.subr.mxu0 0.0
    %200 = vmatpush1.msra.mxu0 %v176
    %201 = vmatprep.subr.mxu0 0.0
    %202 = vmatpush1.msra.mxu0 0.0
    %203 = vmatprep.subr.mxu0 0.0
    %204 = vmatpush1.msra.mxu0 0.0
    %205 = vmatprep.subr.mxu0 0.0
    %206 = vmatpush1.msra.mxu0 0.0
    %207 = vmatprep.subr.mxu0 0.0
    %208 = vmatpush1.msra.mxu0 0.0
    %209 = vmatprep.subr.mxu0 0.0
    %210 = vmatpush1.msra.mxu0 0.0
    %211 = vmatprep.subr.mxu0 0.0
    %212 = vmatpush1.msra.mxu0 0.0
    %213 = vmatprep.subr.mxu0 0.0
    %214 = vmatpush1.msra.mxu0 0.0
    %215 = vmatprep.subr.mxu0 0.0
    %216 = vmatpush1.msra.mxu0 0.0
    %217 = vmatprep.subr.mxu0 0.0
    %218 = vmatpush1.msra.mxu0 0.0
    %219 = vmatprep.subr.mxu0 0.0
    %220 = vmatpush1.msra.mxu0 0.0
    %221 = vmatprep.subr.mxu0 0.0
    %222 = vmatpush1.msra.mxu0 0.0
    %223 = vmatprep.subr.mxu0 0.0
    %224 = vmatpush1.msra.mxu0 0.0
    %225 = vmatprep.subr.mxu0 0.0
    %226 = vmatpush1.msra.mxu0 0.0
    %227 = vmatprep.subr.mxu0 0.0
    %228 = vmatpush1.msra.mxu0 0.0
    %229 = vmatprep.subr.mxu0 0.0
    %230 = vmatpush1.msra.mxu0 0.0
    %231 = vmatprep.subr.mxu0 0.0
    %232 = vmatpush1.msra.mxu0 0.0
    %233 = vmatprep.subr.mxu0 0.0
    %234 = vmatpush1.msra.mxu0 0.0
    %235 = vmatprep.subr.mxu0 0.0
    %236 = vmatpush1.msra.mxu0 0.0
    %237 = vmatprep.subr.mxu0 0.0
    %238 = vmatpush1.msra.mxu0 0.0
    %239 = vmatprep.subr.mxu0 0.0
    %240 = vmatpush1.msra.mxu0 0.0
    %241 = vmatprep.subr.mxu0 0.0
    %242 = vmatpush1.msra.mxu0 0.0
    %243 = vmatprep.subr.mxu0 0.0
    %244 = vmatpush1.msra.mxu0 0.0
    %245 = vmatprep.subr.mxu0 0.0
    %246 = vmatpush1.msra.mxu0 0.0
    %247 = vmatprep.subr.mxu0 0.0
    %248 = vmatpush1.msra.mxu0 0.0
    %249 = vmatprep.subr.mxu0 0.0
    %250 = vmatpush1.msra.mxu0 0.0
    %251 = vmatprep.subr.mxu0 0.0
    %252 = vmatpush1.msra.mxu0 0.0
    %253 = vmatprep.subr.mxu0 0.0
    %254 = vmatpush1.msra.mxu0 0.0
    %255 = vmatprep.subr.mxu0 0.0
    %256 = vmatpush1.msra.mxu0 0.0
    %257 = vmatprep.mubr.f32.mxu0 0.0
    %258 = vmatmul.mubr.f32.gmra.mrb[0].mxu0 %v191
    %v259 = vpop.f32.mrb[0].mxu0
    %v260 = vadd.f32 0.0, %v259
    %v261 = vpop.f32.mrb[0].mxu0
    %262 = vdwg.mxu0
    %263 = vmatprep.subr.mxu0 0.0
    %264 = vmatpush1.msra.mxu0 %v177
    %265 = vmatprep.subr.mxu0 0.0
    %266 = vmatpush1.msra.mxu0 %v178
    %267 = vmatprep.subr.mxu0 0.0
    %268 = vmatpush1.msra.mxu0 %v179
    %269 = vmatprep.subr.mxu0 0.0
    %270 = vmatpush1.msra.mxu0 %v180
    %271 = vmatprep.subr.mxu0 0.0
    %272 = vmatpush1.msra.mxu0 0.0
    %273 = vmatprep.subr.mxu0 0.0
    %274 = vmatpush1.msra.mxu0 0.0
    %275 = vmatprep.subr.mxu0 0.0
    %276 = vmatpush1.msra.mxu0 0.0
    %277 = vmatprep.subr.mxu0 0.0
    %278 = vmatpush1.msra.mxu0 0.0
    %279 = vmatprep.subr.mxu0 0.0
    %280 = vmatpush1.msra.mxu0 0.0
    %281 = vmatprep.subr.mxu0 0.0
    %282 = vmatpush1.msra.mxu0 0.0
    %283 = vmatprep.subr.mxu0 0.0
    %284 = vmatpush1.msra.mxu0 0.0
    %285 = vmatprep.subr.mxu0 0.0
    %286 = vmatpush1.msra.mxu0 0.0
    %287 = vmatprep.subr.mxu0 0.0
    %288 = vmatpush1.msra.mxu0 0.0
    %289 = vmatprep.subr.mxu0 0.0
    %290 = vmatpush1.msra.mxu0 0.0
    %291 = vmatprep.subr.mxu0 0.0
    %292 = vmatpush1.msra.mxu0 0.0
    %293 = vmatprep.subr.mxu0 0.0
    %294 = vmatpush1.msra.mxu0 0.0
    %295 = vmatprep.subr.mxu0 0.0
    %296 = vmatpush1.msra.mxu0 0.0
    %297 = vmatprep.subr.mxu0 0.0
    %298 = vmatpush1.msra.mxu0 0.0
    %299 = vmatprep.subr.mxu0 0.0
    %300 = vmatpush1.msra.mxu0 0.0
    %301 = vmatprep.subr.mxu0 0.0
    %302 = vmatpush1.msra.mxu0 0.0
    %303 = vmatprep.subr.mxu0 0.0
    %304 = vmatpush1.msra.mxu0 0.0
    %305 = vmatprep.subr.mxu0 0.0
    %306 = vmatpush1.msra.mxu0 0.0
    %307 = vmatprep.subr.mxu0 0.0
    %308 = vmatpush1.msra.mxu0 0.0
    %309 = vmatprep.subr.mxu0 0.0
    %310 = vmatpush1.msra.mxu0 0.0
    %311 = vmatprep.subr.mxu0 0.0
    %312 = vmatpush1.msra.mxu0 0.0
    %313 = vmatprep.subr.mxu0 0.0
    %314 = vmatpush1.msra.mxu0 0.0
    %315 = vmatprep.subr.mxu0 0.0
    %316 = vmatpush1.msra.mxu0 0.0
    %317 = vmatprep.subr.mxu0 0.0
    %318 = vmatpush1.msra.mxu0 0.0
    %319 = vmatprep.subr.mxu0 0.0
    %320 = vmatpush1.msra.mxu0 0.0
    %321 = vmatprep.subr.mxu0 0.0
    %322 = vmatpush1.msra.mxu0 0.0
    %323 = vmatprep.subr.mxu0 0.0
    %324 = vmatpush1.msra.mxu0 0.0
    %325 = vmatprep.subr.mxu0 0.0
    %326 = vmatpush1.msra.mxu0 0.0
    %327 = vmatprep.mubr.f32.mxu0 0.0
    %328 = vmatmul.mubr.f32.gmra.mrb[0].mxu0 %v191
    %v329 = vpop.f32.mrb[0].mxu0
    %v330 = vadd.f32 0.0, %v329
    %v331 = vpop.f32.mrb[0].mxu0
    %332 = vdwg.mxu0
    %v334 = vlaneseq
    %v335 = vshrl.u32 %v334, 7
    %v336 = vsub.s32 0, %v335
    %v337 = vrot.slane %v185, %v336
    %339 = vmatprep.subr.mxu0 0.0
    %340 = vmatpush1.msra.mxu0 %v181
    %341 = vmatprep.subr.mxu0 0.0
    %342 = vmatpush1.msra.mxu0 %v182
    %343 = vmatprep.subr.mxu0 0.0
    %344 = vmatpush1.msra.mxu0 %v183
    %345 = vmatprep.subr.mxu0 0.0
    %346 = vmatpush1.msra.mxu0 %v184
    %347 = vmatprep.subr.mxu0 0.0
    %348 = vmatpush1.msra.mxu0 0.0
    %349 = vmatprep.subr.mxu0 0.0
    %350 = vmatpush1.msra.mxu0 0.0
    %351 = vmatprep.subr.mxu0 0.0
    %352 = vmatpush1.msra.mxu0 0.0
    %353 = vmatprep.subr.mxu0 0.0
    %354 = vmatpush1.msra.mxu0 0.0
    %355 = vmatprep.subr.mxu0 0.0
    %356 = vmatpush1.msra.mxu0 0.0
    %357 = vmatprep.subr.mxu0 0.0
    %358 = vmatpush1.msra.mxu0 0.0
    %359 = vmatprep.subr.mxu0 0.0
    %360 = vmatpush1.msra.mxu0 0.0
    %361 = vmatprep.subr.mxu0 0.0
    %362 = vmatpush1.msra.mxu0 0.0
    %363 = vmatprep.subr.mxu0 0.0
    %364 = vmatpush1.msra.mxu0 0.0
    %365 = vmatprep.subr.mxu0 0.0
    %366 = vmatpush1.msra.mxu0 0.0
    %367 = vmatprep.subr.mxu0 0.0
    %368 = vmatpush1.msra.mxu0 0.0
    %369 = vmatprep.subr.mxu0 0.0
    %370 = vmatpush1.msra.mxu0 0.0
    %371 = vmatprep.subr.mxu0 0.0
    %372 = vmatpush1.msra.mxu0 0.0
    %373 = vmatprep.subr.mxu0 0.0
    %374 = vmatpush1.msra.mxu0 0.0
    %375 = vmatprep.subr.mxu0 0.0
    %376 = vmatpush1.msra.mxu0 0.0
    %377 = vmatprep.subr.mxu0 0.0
    %378 = vmatpush1.msra.mxu0 0.0
    %379 = vmatprep.subr.mxu0 0.0
    %380 = vmatpush1.msra.mxu0 0.0
    %381 = vmatprep.subr.mxu0 0.0
    %382 = vmatpush1.msra.mxu0 0.0
    %383 = vmatprep.subr.mxu0 0.0
    %384 = vmatpush1.msra.mxu0 0.0
    %385 = vmatprep.subr.mxu0 0.0
    %386 = vmatpush1.msra.mxu0 0.0
    %387 = vmatprep.subr.mxu0 0.0
    %388 = vmatpush1.msra.mxu0 0.0
    %389 = vmatprep.subr.mxu0 0.0
    %390 = vmatpush1.msra.mxu0 0.0
    %391 = vmatprep.subr.mxu0 0.0
    %392 = vmatpush1.msra.mxu0 0.0
    %393 = vmatprep.subr.mxu0 0.0
    %394 = vmatpush1.msra.mxu0 0.0
    %395 = vmatprep.subr.mxu0 0.0
    %396 = vmatpush1.msra.mxu0 0.0
    %397 = vmatprep.subr.mxu0 0.0
    %398 = vmatpush1.msra.mxu0 0.0
    %399 = vmatprep.subr.mxu0 0.0
    %400 = vmatpush1.msra.mxu0 0.0
    %401 = vmatprep.subr.mxu0 0.0
    %402 = vmatpush1.msra.mxu0 0.0
    %403 = vmatprep.mubr.f32.mxu0 0.0
    %404 = vmatmul.mubr.f32.gmra.mrb[0].mxu0 %v191
    %v405 = vpop.f32.mrb[0].mxu0
    %v406 = vadd.f32 %v337, %v405
    %v407 = vpop.f32.mrb[0].mxu0
    %408 = vdwg.mxu0
    %v409 = vadd.f32 %v187, %v260
    %v410 = vxor.u32 %v409, 2147483648
    %v411 = vmul.f32 %v410, 1.442695
    %v412 = vpow.pop %v411
    %v413 = vadd.f32 %v412, 1.0
    %v414 = vrcp.pop %v413
    %v415 = vmul.f32 1.0, %v414
    %v416 = vadd.f32 %v188, %v330
    %v417 = vxor.u32 %v416, 2147483648
    %v418 = vmul.f32 %v417, 1.442695
    %v419 = vpow.pop %v418
    %v420 = vadd.f32 %v419, 1.0
    %v421 = vrcp.pop %v420
    %v422 = vmul.f32 1.0, %v421
    %v423 = vmul.f32 %v415, %v406
    %v424 = vadd.f32 %v189, %v423
    %v425 = vtanh.pop %v424
    %v426 = vsub.f32 1.0, %v422
    %v427 = vmul.f32 %v426, %v425
    %v428 = vmul.f32 %v422, 0.0
    %v429 = vadd.f32 %v427, %v428
    %vm430 = vcmp.gt.s32.totalorder %v186, 0
    %v431 = vsel %vm430, 1, 0
    %432 = vset.pattern.permute.xlu0 0
    %433 = vperm.xlu0 %432, %v431
    %v434 = vpop.permute.xlu0 %433
    %vm435 = vcmp.eq.s32.totalorder %v434, 1
    %v436 = vsel %vm435, %v429, 0.0
    %v437 = vld [vmem:[#allocation2 + $0x2] sm:$0x3]
    %v438 = vld [vmem:[#allocation3 + $0x2] sm:$0x3]
    %v439 = vld [vmem:[#allocation4 + $0x2] sm:$0x3]
    %v441 = vsel %vm71, %v436, 0
    %443 = vmatprep.subr.mxu0 0.0
    %444 = vmatpush1.msra.mxu0 %v173
    %445 = vmatprep.subr.mxu0 0.0
    %446 = vmatpush1.msra.mxu0 %v174
    %447 = vmatprep.subr.mxu0 0.0
    %448 = vmatpush1.msra.mxu0 %v175
    %449 = vmatprep.subr.mxu0 0.0
    %450 = vmatpush1.msra.mxu0 %v176
    %451 = vmatprep.subr.mxu0 0.0
    %452 = vmatpush1.msra.mxu0 0.0
    %453 = vmatprep.subr.mxu0 0.0
    %454 = vmatpush1.msra.mxu0 0.0
    %455 = vmatprep.subr.mxu0 0.0
    %456 = vmatpush1.msra.mxu0 0.0
    %457 = vmatprep.subr.mxu0 0.0
    %458 = vmatpush1.msra.mxu0 0.0
    %459 = vmatprep.subr.mxu0 0.0
    %460 = vmatpush1.msra.mxu0 0.0
    %461 = vmatprep.subr.mxu0 0.0
    %462 = vmatpush1.msra.mxu0 0.0
    %463 = vmatprep.subr.mxu0 0.0
    %464 = vmatpush1.msra.mxu0 0.0
    %465 = vmatprep.subr.mxu0 0.0
    %466 = vmatpush1.msra.mxu0 0.0
    %467 = vmatprep.subr.mxu0 0.0
    %468 = vmatpush1.msra.mxu0 0.0
    %469 = vmatprep.subr.mxu0 0.0
    %470 = vmatpush1.msra.mxu0 0.0
    %471 = vmatprep.subr.mxu0 0.0
    %472 = vmatpush1.msra.mxu0 0.0
    %473 = vmatprep.subr.mxu0 0.0
    %474 = vmatpush1.msra.mxu0 0.0
    %475 = vmatprep.subr.mxu0 0.0
    %476 = vmatpush1.msra.mxu0 0.0
    %477 = vmatprep.subr.mxu0 0.0
    %478 = vmatpush1.msra.mxu0 0.0
    %479 = vmatprep.subr.mxu0 0.0
    %480 = vmatpush1.msra.mxu0 0.0
    %481 = vmatprep.subr.mxu0 0.0
    %482 = vmatpush1.msra.mxu0 0.0
    %483 = vmatprep.subr.mxu0 0.0
    %484 = vmatpush1.msra.mxu0 0.0
    %485 = vmatprep.subr.mxu0 0.0
    %486 = vmatpush1.msra.mxu0 0.0
    %487 = vmatprep.subr.mxu0 0.0
    %488 = vmatpush1.msra.mxu0 0.0
    %489 = vmatprep.subr.mxu0 0.0
    %490 = vmatpush1.msra.mxu0 0.0
    %491 = vmatprep.subr.mxu0 0.0
    %492 = vmatpush1.msra.mxu0 0.0
    %493 = vmatprep.subr.mxu0 0.0
    %494 = vmatpush1.msra.mxu0 0.0
    %495 = vmatprep.subr.mxu0 0.0
    %496 = vmatpush1.msra.mxu0 0.0
    %497 = vmatprep.subr.mxu0 0.0
    %498 = vmatpush1.msra.mxu0 0.0
    %499 = vmatprep.subr.mxu0 0.0
    %500 = vmatpush1.msra.mxu0 0.0
    %501 = vmatprep.subr.mxu0 0.0
    %502 = vmatpush1.msra.mxu0 0.0
    %503 = vmatprep.subr.mxu0 0.0
    %504 = vmatpush1.msra.mxu0 0.0
    %505 = vmatprep.subr.mxu0 0.0
    %506 = vmatpush1.msra.mxu0 0.0
    %507 = vmatprep.mubr.f32.mxu0 0.0
    %508 = vmatmul.mubr.f32.gmra.mrb[0].mxu0 %v441
    %v509 = vpop.f32.mrb[0].mxu0
    %v510 = vadd.f32 0.0, %v509
    %v511 = vpop.f32.mrb[0].mxu0
    %512 = vdwg.mxu0
    %513 = vmatprep.subr.mxu0 0.0
    %514 = vmatpush1.msra.mxu0 %v177
    %515 = vmatprep.subr.mxu0 0.0
    %516 = vmatpush1.msra.mxu0 %v178
    %517 = vmatprep.subr.mxu0 0.0
    %518 = vmatpush1.msra.mxu0 %v179
    %519 = vmatprep.subr.mxu0 0.0
    %520 = vmatpush1.msra.mxu0 %v180
    %521 = vmatprep.subr.mxu0 0.0
    %522 = vmatpush1.msra.mxu0 0.0
    %523 = vmatprep.subr.mxu0 0.0
    %524 = vmatpush1.msra.mxu0 0.0
    %525 = vmatprep.subr.mxu0 0.0
    %526 = vmatpush1.msra.mxu0 0.0
    %527 = vmatprep.subr.mxu0 0.0
    %528 = vmatpush1.msra.mxu0 0.0
    %529 = vmatprep.subr.mxu0 0.0
    %530 = vmatpush1.msra.mxu0 0.0
    %531 = vmatprep.subr.mxu0 0.0
    %532 = vmatpush1.msra.mxu0 0.0
    %533 = vmatprep.subr.mxu0 0.0
    %534 = vmatpush1.msra.mxu0 0.0
    %535 = vmatprep.subr.mxu0 0.0
    %536 = vmatpush1.msra.mxu0 0.0
    %537 = vmatprep.subr.mxu0 0.0
    %538 = vmatpush1.msra.mxu0 0.0
    %539 = vmatprep.subr.mxu0 0.0
    %540 = vmatpush1.msra.mxu0 0.0
    %541 = vmatprep.subr.mxu0 0.0
    %542 = vmatpush1.msra.mxu0 0.0
    %543 = vmatprep.subr.mxu0 0.0
    %544 = vmatpush1.msra.mxu0 0.0
    %545 = vmatprep.subr.mxu0 0.0
    %546 = vmatpush1.msra.mxu0 0.0
    %547 = vmatprep.subr.mxu0 0.0
    %548 = vmatpush1.msra.mxu0 0.0
    %549 = vmatprep.subr.mxu0 0.0
    %550 = vmatpush1.msra.mxu0 0.0
    %551 = vmatprep.subr.mxu0 0.0
    %552 = vmatpush1.msra.mxu0 0.0
    %553 = vmatprep.subr.mxu0 0.0
    %554 = vmatpush1.msra.mxu0 0.0
    %555 = vmatprep.subr.mxu0 0.0
    %556 = vmatpush1.msra.mxu0 0.0
    %557 = vmatprep.subr.mxu0 0.0
    %558 = vmatpush1.msra.mxu0 0.0
    %559 = vmatprep.subr.mxu0 0.0
    %560 = vmatpush1.msra.mxu0 0.0
    %561 = vmatprep.subr.mxu0 0.0
    %562 = vmatpush1.msra.mxu0 0.0
    %563 = vmatprep.subr.mxu0 0.0
    %564 = vmatpush1.msra.mxu0 0.0
    %565 = vmatprep.subr.mxu0 0.0
    %566 = vmatpush1.msra.mxu0 0.0
    %567 = vmatprep.subr.mxu0 0.0
    %568 = vmatpush1.msra.mxu0 0.0
    %569 = vmatprep.subr.mxu0 0.0
    %570 = vmatpush1.msra.mxu0 0.0
    %571 = vmatprep.subr.mxu0 0.0
    %572 = vmatpush1.msra.mxu0 0.0
    %573 = vmatprep.subr.mxu0 0.0
    %574 = vmatpush1.msra.mxu0 0.0
    %575 = vmatprep.subr.mxu0 0.0
    %576 = vmatpush1.msra.mxu0 0.0
    %577 = vmatprep.mubr.f32.mxu0 0.0
    %578 = vmatmul.mubr.f32.gmra.mrb[0].mxu0 %v441
    %v579 = vpop.f32.mrb[0].mxu0
    %v580 = vadd.f32 0.0, %v579
    %v581 = vpop.f32.mrb[0].mxu0
    %582 = vdwg.mxu0
    %583 = vmatprep.subr.mxu0 0.0
    %584 = vmatpush1.msra.mxu0 %v181
    %585 = vmatprep.subr.mxu0 0.0
    %586 = vmatpush1.msra.mxu0 %v182
    %587 = vmatprep.subr.mxu0 0.0
    %588 = vmatpush1.msra.mxu0 %v183
    %589 = vmatprep.subr.mxu0 0.0
    %590 = vmatpush1.msra.mxu0 %v184
    %591 = vmatprep.subr.mxu0 0.0
    %592 = vmatpush1.msra.mxu0 0.0
    %593 = vmatprep.subr.mxu0 0.0
    %594 = vmatpush1.msra.mxu0 0.0
    %595 = vmatprep.subr.mxu0 0.0
    %596 = vmatpush1.msra.mxu0 0.0
    %597 = vmatprep.subr.mxu0 0.0
    %598 = vmatpush1.msra.mxu0 0.0
    %599 = vmatprep.subr.mxu0 0.0
    %600 = vmatpush1.msra.mxu0 0.0
    %601 = vmatprep.subr.mxu0 0.0
    %602 = vmatpush1.msra.mxu0 0.0
    %603 = vmatprep.subr.mxu0 0.0
    %604 = vmatpush1.msra.mxu0 0.0
    %605 = vmatprep.subr.mxu0 0.0
    %606 = vmatpush1.msra.mxu0 0.0
    %607 = vmatprep.subr.mxu0 0.0
    %608 = vmatpush1.msra.mxu0 0.0
    %609 = vmatprep.subr.mxu0 0.0
    %610 = vmatpush1.msra.mxu0 0.0
    %611 = vmatprep.subr.mxu0 0.0
    %612 = vmatpush1.msra.mxu0 0.0
    %613 = vmatprep.subr.mxu0 0.0
    %614 = vmatpush1.msra.mxu0 0.0
    %615 = vmatprep.subr.mxu0 0.0
    %616 = vmatpush1.msra.mxu0 0.0
    %617 = vmatprep.subr.mxu0 0.0
    %618 = vmatpush1.msra.mxu0 0.0
    %619 = vmatprep.subr.mxu0 0.0
    %620 = vmatpush1.msra.mxu0 0.0
    %621 = vmatprep.subr.mxu0 0.0
    %622 = vmatpush1.msra.mxu0 0.0
    %623 = vmatprep.subr.mxu0 0.0
    %624 = vmatpush1.msra.mxu0 0.0
    %625 = vmatprep.subr.mxu0 0.0
    %626 = vmatpush1.msra.mxu0 0.0
    %627 = vmatprep.subr.mxu0 0.0
    %628 = vmatpush1.msra.mxu0 0.0
    %629 = vmatprep.subr.mxu0 0.0
    %630 = vmatpush1.msra.mxu0 0.0
    %631 = vmatprep.subr.mxu0 0.0
    %632 = vmatpush1.msra.mxu0 0.0
    %633 = vmatprep.subr.mxu0 0.0
    %634 = vmatpush1.msra.mxu0 0.0
    %635 = vmatprep.subr.mxu0 0.0
    %636 = vmatpush1.msra.mxu0 0.0
    %637 = vmatprep.subr.mxu0 0.0
    %638 = vmatpush1.msra.mxu0 0.0
    %639 = vmatprep.subr.mxu0 0.0
    %640 = vmatpush1.msra.mxu0 0.0
    %641 = vmatprep.subr.mxu0 0.0
    %642 = vmatpush1.msra.mxu0 0.0
    %643 = vmatprep.subr.mxu0 0.0
    %644 = vmatpush1.msra.mxu0 0.0
    %645 = vmatprep.subr.mxu0 0.0
    %646 = vmatpush1.msra.mxu0 0.0
    %647 = vmatprep.mubr.f32.mxu0 0.0
    %648 = vmatmul.mubr.f32.gmra.mrb[0].mxu0 %v441
    %v649 = vpop.f32.mrb[0].mxu0
    %v650 = vadd.f32 %v337, %v649
    %v651 = vpop.f32.mrb[0].mxu0
    %652 = vdwg.mxu0
    %v653 = vadd.f32 %v437, %v510
    %v654 = vxor.u32 %v653, 2147483648
    %v655 = vmul.f32 %v654, 1.442695
    %v656 = vpow.pop %v655
    %v657 = vadd.f32 %v656, 1.0
    %v658 = vrcp.pop %v657
    %v659 = vmul.f32 1.0, %v658
    %v660 = vadd.f32 %v438, %v580
    %v661 = vxor.u32 %v660, 2147483648
    %v662 = vmul.f32 %v661, 1.442695
    %v663 = vpow.pop %v662
    %v664 = vadd.f32 %v663, 1.0
    %v665 = vrcp.pop %v664
    %v666 = vmul.f32 1.0, %v665
    %v667 = vmul.f32 %v659, %v650
    %v668 = vadd.f32 %v439, %v667
    %v669 = vtanh.pop %v668
    %v670 = vsub.f32 1.0, %v666
    %v671 = vmul.f32 %v670, %v669
    %v672 = vmul.f32 %v666, %v436
    %v673 = vadd.f32 %v671, %v672
    %vm674 = vcmp.gt.s32.totalorder %v186, 1
    %v675 = vsel %vm674, 1, 0
    %676 = vset.pattern.permute.xlu0 0
    %677 = vperm.xlu0 %676, %v675
    %v678 = vpop.permute.xlu0 %677
    %vm679 = vcmp.eq.s32.totalorder %v678, 1
    %v680 = vsel %vm679, %v673, %v436
    %v681 = vld [vmem:[#allocation2 + $0x4] sm:$0x3]
    %v682 = vld [vmem:[#allocation3 + $0x4] sm:$0x3]
    %v683 = vld [vmem:[#allocation4 + $0x4] sm:$0x3]
    %v685 = vsel %vm71, %v680, 0
    %687 = vmatprep.subr.mxu0 0.0
    %688 = vmatpush1.msra.mxu0 %v173
    %689 = vmatprep.subr.mxu0 0.0
    %690 = vmatpush1.msra.mxu0 %v174
    %691 = vmatprep.subr.mxu0 0.0
    %692 = vmatpush1.msra.mxu0 %v175
    %693 = vmatprep.subr.mxu0 0.0
    %694 = vmatpush1.msra.mxu0 %v176
    %695 = vmatprep.subr.mxu0 0.0
    %696 = vmatpush1.msra.mxu0 0.0
    %697 = vmatprep.subr.mxu0 0.0
    %698 = vmatpush1.msra.mxu0 0.0
    %699 = vmatprep.subr.mxu0 0.0
    %700 = vmatpush1.msra.mxu0 0.0
    %701 = vmatprep.subr.mxu0 0.0
    %702 = vmatpush1.msra.mxu0 0.0
    %703 = vmatprep.subr.mxu0 0.0
    %704 = vmatpush1.msra.mxu0 0.0
    %705 = vmatprep.subr.mxu0 0.0
    %706 = vmatpush1.msra.mxu0 0.0
    %707 = vmatprep.subr.mxu0 0.0
    %708 = vmatpush1.msra.mxu0 0.0
    %709 = vmatprep.subr.mxu0 0.0
    %710 = vmatpush1.msra.mxu0 0.0
    %711 = vmatprep.subr.mxu0 0.0
    %712 = vmatpush1.msra.mxu0 0.0
    %713 = vmatprep.subr.mxu0 0.0
    %714 = vmatpush1.msra.mxu0 0.0
    %715 = vmatprep.subr.mxu0 0.0
    %716 = vmatpush1.msra.mxu0 0.0
    %717 = vmatprep.subr.mxu0 0.0
    %718 = vmatpush1.msra.mxu0 0.0
    %719 = vmatprep.subr.mxu0 0.0
    %720 = vmatpush1.msra.mxu0 0.0
    %721 = vmatprep.subr.mxu0 0.0
    %722 = vmatpush1.msra.mxu0 0.0
    %723 = vmatprep.subr.mxu0 0.0
    %724 = vmatpush1.msra.mxu0 0.0
    %725 = vmatprep.subr.mxu0 0.0
    %726 = vmatpush1.msra.mxu0 0.0
    %727 = vmatprep.subr.mxu0 0.0
    %728 = vmatpush1.msra.mxu0 0.0
    %729 = vmatprep.subr.mxu0 0.0
    %730 = vmatpush1.msra.mxu0 0.0
    %731 = vmatprep.subr.mxu0 0.0
    %732 = vmatpush1.msra.mxu0 0.0
    %733 = vmatprep.subr.mxu0 0.0
    %734 = vmatpush1.msra.mxu0 0.0
    %735 = vmatprep.subr.mxu0 0.0
    %736 = vmatpush1.msra.mxu0 0.0
    %737 = vmatprep.subr.mxu0 0.0
    %738 = vmatpush1.msra.mxu0 0.0
    %739 = vmatprep.subr.mxu0 0.0
    %740 = vmatpush1.msra.mxu0 0.0
    %741 = vmatprep.subr.mxu0 0.0
    %742 = vmatpush1.msra.mxu0 0.0
    %743 = vmatprep.subr.mxu0 0.0
    %744 = vmatpush1.msra.mxu0 0.0
    %745 = vmatprep.subr.mxu0 0.0
    %746 = vmatpush1.msra.mxu0 0.0
    %747 = vmatprep.subr.mxu0 0.0
    %748 = vmatpush1.msra.mxu0 0.0
    %749 = vmatprep.subr.mxu0 0.0
    %750 = vmatpush1.msra.mxu0 0.0
    %751 = vmatprep.mubr.f32.mxu0 0.0
    %752 = vmatmul.mubr.f32.gmra.mrb[0].mxu0 %v685
    %v753 = vpop.f32.mrb[0].mxu0
    %v754 = vadd.f32 0.0, %v753
    %v755 = vpop.f32.mrb[0].mxu0
    %756 = vdwg.mxu0
    %757 = vmatprep.subr.mxu0 0.0
    %758 = vmatpush1.msra.mxu0 %v177
    %759 = vmatprep.subr.mxu0 0.0
    %760 = vmatpush1.msra.mxu0 %v178
    %761 = vmatprep.subr.mxu0 0.0
    %762 = vmatpush1.msra.mxu0 %v179
    %763 = vmatprep.subr.mxu0 0.0
    %764 = vmatpush1.msra.mxu0 %v180
    %765 = vmatprep.subr.mxu0 0.0
    %766 = vmatpush1.msra.mxu0 0.0
    %767 = vmatprep.subr.mxu0 0.0
    %768 = vmatpush1.msra.mxu0 0.0
    %769 = vmatprep.subr.mxu0 0.0
    %770 = vmatpush1.msra.mxu0 0.0
    %771 = vmatprep.subr.mxu0 0.0
    %772 = vmatpush1.msra.mxu0 0.0
    %773 = vmatprep.subr.mxu0 0.0
    %774 = vmatpush1.msra.mxu0 0.0
    %775 = vmatprep.subr.mxu0 0.0
    %776 = vmatpush1.msra.mxu0 0.0
    %777 = vmatprep.subr.mxu0 0.0
    %778 = vmatpush1.msra.mxu0 0.0
    %779 = vmatprep.subr.mxu0 0.0
    %780 = vmatpush1.msra.mxu0 0.0
    %781 = vmatprep.subr.mxu0 0.0
    %782 = vmatpush1.msra.mxu0 0.0
    %783 = vmatprep.subr.mxu0 0.0
    %784 = vmatpush1.msra.mxu0 0.0
    %785 = vmatprep.subr.mxu0 0.0
    %786 = vmatpush1.msra.mxu0 0.0
    %787 = vmatprep.subr.mxu0 0.0
    %788 = vmatpush1.msra.mxu0 0.0
    %789 = vmatprep.subr.mxu0 0.0
    %790 = vmatpush1.msra.mxu0 0.0
    %791 = vmatprep.subr.mxu0 0.0
    %792 = vmatpush1.msra.mxu0 0.0
    %793 = vmatprep.subr.mxu0 0.0
    %794 = vmatpush1.msra.mxu0 0.0
    %795 = vmatprep.subr.mxu0 0.0
    %796 = vmatpush1.msra.mxu0 0.0
    %797 = vmatprep.subr.mxu0 0.0
    %798 = vmatpush1.msra.mxu0 0.0
    %799 = vmatprep.subr.mxu0 0.0
    %800 = vmatpush1.msra.mxu0 0.0
    %801 = vmatprep.subr.mxu0 0.0
    %802 = vmatpush1.msra.mxu0 0.0
    %803 = vmatprep.subr.mxu0 0.0
    %804 = vmatpush1.msra.mxu0 0.0
    %805 = vmatprep.subr.mxu0 0.0
    %806 = vmatpush1.msra.mxu0 0.0
    %807 = vmatprep.subr.mxu0 0.0
    %808 = vmatpush1.msra.mxu0 0.0
    %809 = vmatprep.subr.mxu0 0.0
    %810 = vmatpush1.msra.mxu0 0.0
    %811 = vmatprep.subr.mxu0 0.0
    %812 = vmatpush1.msra.mxu0 0.0
    %813 = vmatprep.subr.mxu0 0.0
    %814 = vmatpush1.msra.mxu0 0.0
    %815 = vmatprep.subr.mxu0 0.0
    %816 = vmatpush1.msra.mxu0 0.0
    %817 = vmatprep.subr.mxu0 0.0
    %818 = vmatpush1.msra.mxu0 0.0
    %819 = vmatprep.subr.mxu0 0.0
    %820 = vmatpush1.msra.mxu0 0.0
    %821 = vmatprep.mubr.f32.mxu0 0.0
    %822 = vmatmul.mubr.f32.gmra.mrb[0].mxu0 %v685
    %v823 = vpop.f32.mrb[0].mxu0
    %v824 = vadd.f32 0.0, %v823
    %v825 = vpop.f32.mrb[0].mxu0
    %826 = vdwg.mxu0
    %827 = vmatprep.subr.mxu0 0.0
    %828 = vmatpush1.msra.mxu0 %v181
    %829 = vmatprep.subr.mxu0 0.0
    %830 = vmatpush1.msra.mxu0 %v182
    %831 = vmatprep.subr.mxu0 0.0
    %832 = vmatpush1.msra.mxu0 %v183
    %833 = vmatprep.subr.mxu0 0.0
    %834 = vmatpush1.msra.mxu0 %v184
    %835 = vmatprep.subr.mxu0 0.0
    %836 = vmatpush1.msra.mxu0 0.0
    %837 = vmatprep.subr.mxu0 0.0
    %838 = vmatpush1.msra.mxu0 0.0
    %839 = vmatprep.subr.mxu0 0.0
    %840 = vmatpush1.msra.mxu0 0.0
    %841 = vmatprep.subr.mxu0 0.0
    %842 = vmatpush1.msra.mxu0 0.0
    %843 = vmatprep.subr.mxu0 0.0
    %844 = vmatpush1.msra.mxu0 0.0
    %845 = vmatprep.subr.mxu0 0.0
    %846 = vmatpush1.msra.mxu0 0.0
    %847 = vmatprep.subr.mxu0 0.0
    %848 = vmatpush1.msra.mxu0 0.0
    %849 = vmatprep.subr.mxu0 0.0
    %850 = vmatpush1.msra.mxu0 0.0
    %851 = vmatprep.subr.mxu0 0.0
    %852 = vmatpush1.msra.mxu0 0.0
    %853 = vmatprep.subr.mxu0 0.0
    %854 = vmatpush1.msra.mxu0 0.0
    %855 = vmatprep.subr.mxu0 0.0
    %856 = vmatpush1.msra.mxu0 0.0
    %857 = vmatprep.subr.mxu0 0.0
    %858 = vmatpush1.msra.mxu0 0.0
    %859 = vmatprep.subr.mxu0 0.0
    %860 = vmatpush1.msra.mxu0 0.0
    %861 = vmatprep.subr.mxu0 0.0
    %862 = vmatpush1.msra.mxu0 0.0
    %863 = vmatprep.subr.mxu0 0.0
    %864 = vmatpush1.msra.mxu0 0.0
    %865 = vmatprep.subr.mxu0 0.0
    %866 = vmatpush1.msra.mxu0 0.0
    %867 = vmatprep.subr.mxu0 0.0
    %868 = vmatpush1.msra.mxu0 0.0
    %869 = vmatprep.subr.mxu0 0.0
    %870 = vmatpush1.msra.mxu0 0.0
    %871 = vmatprep.subr.mxu0 0.0
    %872 = vmatpush1.msra.mxu0 0.0
    %873 = vmatprep.subr.mxu0 0.0
    %874 = vmatpush1.msra.mxu0 0.0
    %875 = vmatprep.subr.mxu0 0.0
    %876 = vmatpush1.msra.mxu0 0.0
    %877 = vmatprep.subr.mxu0 0.0
    %878 = vmatpush1.msra.mxu0 0.0
    %879 = vmatprep.subr.mxu0 0.0
    %880 = vmatpush1.msra.mxu0 0.0
    %881 = vmatprep.subr.mxu0 0.0
    %882 = vmatpush1.msra.mxu0 0.0
    %883 = vmatprep.subr.mxu0 0.0
    %884 = vmatpush1.msra.mxu0 0.0
    %885 = vmatprep.subr.mxu0 0.0
    %886 = vmatpush1.msra.mxu0 0.0
    %887 = vmatprep.subr.mxu0 0.0
    %888 = vmatpush1.msra.mxu0 0.0
    %889 = vmatprep.subr.mxu0 0.0
    %890 = vmatpush1.msra.mxu0 0.0
    %891 = vmatprep.mubr.f32.mxu0 0.0
    %892 = vmatmul.mubr.f32.gmra.mrb[0].mxu0 %v685
    %v893 = vpop.f32.mrb[0].mxu0
    %v894 = vadd.f32 %v337, %v893
    %v895 = vpop.f32.mrb[0].mxu0
    %896 = vdwg.mxu0
    %v897 = vadd.f32 %v681, %v754
    %v898 = vxor.u32 %v897, 2147483648
    %v899 = vmul.f32 %v898, 1.442695
    %v900 = vpow.pop %v899
    %v901 = vadd.f32 %v900, 1.0
    %v902 = vrcp.pop %v901
    %v903 = vmul.f32 1.0, %v902
    %v904 = vadd.f32 %v682, %v824
    %v905 = vxor.u32 %v904, 2147483648
    %v906 = vmul.f32 %v905, 1.442695
    %v907 = vpow.pop %v906
    %v908 = vadd.f32 %v907, 1.0
    %v909 = vrcp.pop %v908
    %v910 = vmul.f32 1.0, %v909
    %v911 = vmul.f32 %v903, %v894
    %v912 = vadd.f32 %v683, %v911
    %v913 = vtanh.pop %v912
    %v914 = vsub.f32 1.0, %v910
    %v915 = vmul.f32 %v914, %v913
    %v916 = vmul.f32 %v910, %v680
    %v917 = vadd.f32 %v915, %v916
    %vm918 = vcmp.gt.s32.totalorder %v186, 2
    %v919 = vsel %vm918, 1, 0
    %920 = vset.pattern.permute.xlu0 0
    %921 = vperm.xlu0 %920, %v919
    %v922 = vpop.permute.xlu0 %921
    %vm923 = vcmp.eq.s32.totalorder %v922, 1
    %v924 = vsel %vm923, %v917, %v680
    %v925 = vld [vmem:[#allocation2 + $0x6] sm:$0x3]
    %v926 = vld [vmem:[#allocation3 + $0x6] sm:$0x3]
    %v927 = vld [vmem:[#allocation4 + $0x6] sm:$0x3]
    %v929 = vsel %vm71, %v924, 0
    %931 = vmatprep.subr.mxu0 0.0
    %932 = vmatpush1.msra.mxu0 %v173
    %933 = vmatprep.subr.mxu0 0.0
    %934 = vmatpush1.msra.mxu0 %v174
    %935 = vmatprep.subr.mxu0 0.0
    %936 = vmatpush1.msra.mxu0 %v175
    %937 = vmatprep.subr.mxu0 0.0
    %938 = vmatpush1.msra.mxu0 %v176
    %939 = vmatprep.subr.mxu0 0.0
    %940 = vmatpush1.msra.mxu0 0.0
    %941 = vmatprep.subr.mxu0 0.0
    %942 = vmatpush1.msra.mxu0 0.0
    %943 = vmatprep.subr.mxu0 0.0
    %944 = vmatpush1.msra.mxu0 0.0
    %945 = vmatprep.subr.mxu0 0.0
    %946 = vmatpush1.msra.mxu0 0.0
    %947 = vmatprep.subr.mxu0 0.0
    %948 = vmatpush1.msra.mxu0 0.0
    %949 = vmatprep.subr.mxu0 0.0
    %950 = vmatpush1.msra.mxu0 0.0
    %951 = vmatprep.subr.mxu0 0.0
    %952 = vmatpush1.msra.mxu0 0.0
    %953 = vmatprep.subr.mxu0 0.0
    %954 = vmatpush1.msra.mxu0 0.0
    %955 = vmatprep.subr.mxu0 0.0
    %956 = vmatpush1.msra.mxu0 0.0
    %957 = vmatprep.subr.mxu0 0.0
    %958 = vmatpush1.msra.mxu0 0.0
    %959 = vmatprep.subr.mxu0 0.0
    %960 = vmatpush1.msra.mxu0 0.0
    %961 = vmatprep.subr.mxu0 0.0
    %962 = vmatpush1.msra.mxu0 0.0
    %963 = vmatprep.subr.mxu0 0.0
    %964 = vmatpush1.msra.mxu0 0.0
    %965 = vmatprep.subr.mxu0 0.0
    %966 = vmatpush1.msra.mxu0 0.0
    %967 = vmatprep.subr.mxu0 0.0
    %968 = vmatpush1.msra.mxu0 0.0
    %969 = vmatprep.subr.mxu0 0.0
    %970 = vmatpush1.msra.mxu0 0.0
    %971 = vmatprep.subr.mxu0 0.0
    %972 = vmatpush1.msra.mxu0 0.0
    %973 = vmatprep.subr.mxu0 0.0
    %974 = vmatpush1.msra.mxu0 0.0
    %975 = vmatprep.subr.mxu0 0.0
    %976 = vmatpush1.msra.mxu0 0.0
    %977 = vmatprep.subr.mxu0 0.0
    %978 = vmatpush1.msra.mxu0 0.0
    %979 = vmatprep.subr.mxu0 0.0
    %980 = vmatpush1.msra.mxu0 0.0
    %981 = vmatprep.subr.mxu0 0.0
    %982 = vmatpush1.msra.mxu0 0.0
    %983 = vmatprep.subr.mxu0 0.0
    %984 = vmatpush1.msra.mxu0 0.0
    %985 = vmatprep.subr.mxu0 0.0
    %986 = vmatpush1.msra.mxu0 0.0
    %987 = vmatprep.subr.mxu0 0.0
    %988 = vmatpush1.msra.mxu0 0.0
    %989 = vmatprep.subr.mxu0 0.0
    %990 = vmatpush1.msra.mxu0 0.0
    %991 = vmatprep.subr.mxu0 0.0
    %992 = vmatpush1.msra.mxu0 0.0
    %993 = vmatprep.subr.mxu0 0.0
    %994 = vmatpush1.msra.mxu0 0.0
    %995 = vmatprep.mubr.f32.mxu0 0.0
    %996 = vmatmul.mubr.f32.gmra.mrb[0].mxu0 %v929
    %v997 = vpop.f32.mrb[0].mxu0
    %v998 = vadd.f32 0.0, %v997
    %v999 = vpop.f32.mrb[0].mxu0
    %1000 = vdwg.mxu0
    %1001 = vmatprep.subr.mxu0 0.0
    %1002 = vmatpush1.msra.mxu0 %v177
    %1003 = vmatprep.subr.mxu0 0.0
    %1004 = vmatpush1.msra.mxu0 %v178
    %1005 = vmatprep.subr.mxu0 0.0
    %1006 = vmatpush1.msra.mxu0 %v179
    %1007 = vmatprep.subr.mxu0 0.0
    %1008 = vmatpush1.msra.mxu0 %v180
    %1009 = vmatprep.subr.mxu0 0.0
    %1010 = vmatpush1.msra.mxu0 0.0
    %1011 = vmatprep.subr.mxu0 0.0
    %1012 = vmatpush1.msra.mxu0 0.0
    %1013 = vmatprep.subr.mxu0 0.0
    %1014 = vmatpush1.msra.mxu0 0.0
    %1015 = vmatprep.subr.mxu0 0.0
    %1016 = vmatpush1.msra.mxu0 0.0
    %1017 = vmatprep.subr.mxu0 0.0
    %1018 = vmatpush1.msra.mxu0 0.0
    %1019 = vmatprep.subr.mxu0 0.0
    %1020 = vmatpush1.msra.mxu0 0.0
    %1021 = vmatprep.subr.mxu0 0.0
    %1022 = vmatpush1.msra.mxu0 0.0
    %1023 = vmatprep.subr.mxu0 0.0
    %1024 = vmatpush1.msra.mxu0 0.0
    %1025 = vmatprep.subr.mxu0 0.0
    %1026 = vmatpush1.msra.mxu0 0.0
    %1027 = vmatprep.subr.mxu0 0.0
    %1028 = vmatpush1.msra.mxu0 0.0
    %1029 = vmatprep.subr.mxu0 0.0
    %1030 = vmatpush1.msra.mxu0 0.0
    %1031 = vmatprep.subr.mxu0 0.0
    %1032 = vmatpush1.msra.mxu0 0.0
    %1033 = vmatprep.subr.mxu0 0.0
    %1034 = vmatpush1.msra.mxu0 0.0
    %1035 = vmatprep.subr.mxu0 0.0
    %1036 = vmatpush1.msra.mxu0 0.0
    %1037 = vmatprep.subr.mxu0 0.0
    %1038 = vmatpush1.msra.mxu0 0.0
    %1039 = vmatprep.subr.mxu0 0.0
    %1040 = vmatpush1.msra.mxu0 0.0
    %1041 = vmatprep.subr.mxu0 0.0
    %1042 = vmatpush1.msra.mxu0 0.0
    %1043 = vmatprep.subr.mxu0 0.0
    %1044 = vmatpush1.msra.mxu0 0.0
    %1045 = vmatprep.subr.mxu0 0.0
    %1046 = vmatpush1.msra.mxu0 0.0
    %1047 = vmatprep.subr.mxu0 0.0
    %1048 = vmatpush1.msra.mxu0 0.0
    %1049 = vmatprep.subr.mxu0 0.0
    %1050 = vmatpush1.msra.mxu0 0.0
    %1051 = vmatprep.subr.mxu0 0.0
    %1052 = vmatpush1.msra.mxu0 0.0
    %1053 = vmatprep.subr.mxu0 0.0
    %1054 = vmatpush1.msra.mxu0 0.0
    %1055 = vmatprep.subr.mxu0 0.0
    %1056 = vmatpush1.msra.mxu0 0.0
    %1057 = vmatprep.subr.mxu0 0.0
    %1058 = vmatpush1.msra.mxu0 0.0
    %1059 = vmatprep.subr.mxu0 0.0
    %1060 = vmatpush1.msra.mxu0 0.0
    %1061 = vmatprep.subr.mxu0 0.0
    %1062 = vmatpush1.msra.mxu0 0.0
    %1063 = vmatprep.subr.mxu0 0.0
    %1064 = vmatpush1.msra.mxu0 0.0
    %1065 = vmatprep.mubr.f32.mxu0 0.0
    %1066 = vmatmul.mubr.f32.gmra.mrb[0].mxu0 %v929
    %v1067 = vpop.f32.mrb[0].mxu0
    %v1068 = vadd.f32 0.0, %v1067
    %v1069 = vpop.f32.mrb[0].mxu0
    %1070 = vdwg.mxu0
    %1071 = vmatprep.subr.mxu0 0.0
    %1072 = vmatpush1.msra.mxu0 %v181
    %1073 = vmatprep.subr.mxu0 0.0
    %1074 = vmatpush1.msra.mxu0 %v182
    %1075 = vmatprep.subr.mxu0 0.0
    %1076 = vmatpush1.msra.mxu0 %v183
    %1077 = vmatprep.subr.mxu0 0.0
    %1078 = vmatpush1.msra.mxu0 %v184
    %1079 = vmatprep.subr.mxu0 0.0
    %1080 = vmatpush1.msra.mxu0 0.0
    %1081 = vmatprep.subr.mxu0 0.0
    %1082 = vmatpush1.msra.mxu0 0.0
    %1083 = vmatprep.subr.mxu0 0.0
    %1084 = vmatpush1.msra.mxu0 0.0
    %1085 = vmatprep.subr.mxu0 0.0
    %1086 = vmatpush1.msra.mxu0 0.0
    %1087 = vmatprep.subr.mxu0 0.0
    %1088 = vmatpush1.msra.mxu0 0.0
    %1089 = vmatprep.subr.mxu0 0.0
    %1090 = vmatpush1.msra.mxu0 0.0
    %1091 = vmatprep.subr.mxu0 0.0
    %1092 = vmatpush1.msra.mxu0 0.0
    %1093 = vmatprep.subr.mxu0 0.0
    %1094 = vmatpush1.msra.mxu0 0.0
    %1095 = vmatprep.subr.mxu0 0.0
    %1096 = vmatpush1.msra.mxu0 0.0
    %1097 = vmatprep.subr.mxu0 0.0
    %1098 = vmatpush1.msra.mxu0 0.0
    %1099 = vmatprep.subr.mxu0 0.0
    %1100 = vmatpush1.msra.mxu0 0.0
    %1101 = vmatprep.subr.mxu0 0.0
    %1102 = vmatpush1.msra.mxu0 0.0
    %1103 = vmatprep.subr.mxu0 0.0
    %1104 = vmatpush1.msra.mxu0 0.0
    %1105 = vmatprep.subr.mxu0 0.0
    %1106 = vmatpush1.msra.mxu0 0.0
    %1107 = vmatprep.subr.mxu0 0.0
    %1108 = vmatpush1.msra.mxu0 0.0
    %1109 = vmatprep.subr.mxu0 0.0
    %1110 = vmatpush1.msra.mxu0 0.0
    %1111 = vmatprep.subr.mxu0 0.0
    %1112 = vmatpush1.msra.mxu0 0.0
    %1113 = vmatprep.subr.mxu0 0.0
    %1114 = vmatpush1.msra.mxu0 0.0
    %1115 = vmatprep.subr.mxu0 0.0
    %1116 = vmatpush1.msra.mxu0 0.0
    %1117 = vmatprep.subr.mxu0 0.0
    %1118 = vmatpush1.msra.mxu0 0.0
    %1119 = vmatprep.subr.mxu0 0.0
    %1120 = vmatpush1.msra.mxu0 0.0
    %1121 = vmatprep.subr.mxu0 0.0
    %1122 = vmatpush1.msra.mxu0 0.0
    %1123 = vmatprep.subr.mxu0 0.0
    %1124 = vmatpush1.msra.mxu0 0.0
    %1125 = vmatprep.subr.mxu0 0.0
    %1126 = vmatpush1.msra.mxu0 0.0
    %1127 = vmatprep.subr.mxu0 0.0
    %1128 = vmatpush1.msra.mxu0 0.0
    %1129 = vmatprep.subr.mxu0 0.0
    %1130 = vmatpush1.msra.mxu0 0.0
    %1131 = vmatprep.subr.mxu0 0.0
    %1132 = vmatpush1.msra.mxu0 0.0
    %1133 = vmatprep.subr.mxu0 0.0
    %1134 = vmatpush1.msra.mxu0 0.0
    %1135 = vmatprep.mubr.f32.mxu0 0.0
    %1136 = vmatmul.mubr.f32.gmra.mrb[0].mxu0 %v929
    %v1137 = vpop.f32.mrb[0].mxu0
    %v1138 = vadd.f32 %v337, %v1137
    %v1139 = vpop.f32.mrb[0].mxu0
    %1140 = vdwg.mxu0
    %v1141 = vadd.f32 %v925, %v998
    %v1142 = vxor.u32 %v1141, 2147483648
    %v1143 = vmul.f32 %v1142, 1.442695
    %v1144 = vpow.pop %v1143
    %v1145 = vadd.f32 %v1144, 1.0
    %v1146 = vrcp.pop %v1145
    %v1147 = vmul.f32 1.0, %v1146
    %v1148 = vadd.f32 %v926, %v1068
    %v1149 = vxor.u32 %v1148, 2147483648
    %v1150 = vmul.f32 %v1149, 1.442695
    %v1151 = vpow.pop %v1150
    %v1152 = vadd.f32 %v1151, 1.0
    %v1153 = vrcp.pop %v1152
    %v1154 = vmul.f32 1.0, %v1153
    %v1155 = vmul.f32 %v1147, %v1138
    %v1156 = vadd.f32 %v927, %v1155
    %v1157 = vtanh.pop %v1156
    %v1158 = vsub.f32 1.0, %v1154
    %v1159 = vmul.f32 %v1158, %v1157
    %v1160 = vmul.f32 %v1154, %v924
    %v1161 = vadd.f32 %v1159, %v1160
    %vm1162 = vcmp.gt.s32.totalorder %v186, 3
    %v1163 = vsel %vm1162, 1, 0
    %1164 = vset.pattern.permute.xlu0 0
    %1165 = vperm.xlu0 %1164, %v1163
    %v1166 = vpop.permute.xlu0 %1165
    %vm1167 = vcmp.eq.s32.totalorder %v1166, 1
    %v1168 = vsel %vm1167, %v1161, %v924
    %v1169 = vld [vmem:[#allocation2 + $0x8] sm:$0x3]
    %v1170 = vld [vmem:[#allocation3 + $0x8] sm:$0x3]
    %v1171 = vld [vmem:[#allocation4 + $0x8] sm:$0x3]
    %v1173 = vsel %vm71, %v1168, 0
    %1175 = vmatprep.subr.mxu0 0.0
    %1176 = vmatpush1.msra.mxu0 %v173
    %1177 = vmatprep.subr.mxu0 0.0
    %1178 = vmatpush1.msra.mxu0 %v174
    %1179 = vmatprep.subr.mxu0 0.0
    %1180 = vmatpush1.msra.mxu0 %v175
    %1181 = vmatprep.subr.mxu0 0.0
    %1182 = vmatpush1.msra.mxu0 %v176
    %1183 = vmatprep.subr.mxu0 0.0
    %1184 = vmatpush1.msra.mxu0 0.0
    %1185 = vmatprep.subr.mxu0 0.0
    %1186 = vmatpush1.msra.mxu0 0.0
    %1187 = vmatprep.subr.mxu0 0.0
    %1188 = vmatpush1.msra.mxu0 0.0
    %1189 = vmatprep.subr.mxu0 0.0
    %1190 = vmatpush1.msra.mxu0 0.0
    %1191 = vmatprep.subr.mxu0 0.0
    %1192 = vmatpush1.msra.mxu0 0.0
    %1193 = vmatprep.subr.mxu0 0.0
    %1194 = vmatpush1.msra.mxu0 0.0
    %1195 = vmatprep.subr.mxu0 0.0
    %1196 = vmatpush1.msra.mxu0 0.0
    %1197 = vmatprep.subr.mxu0 0.0
    %1198 = vmatpush1.msra.mxu0 0.0
    %1199 = vmatprep.subr.mxu0 0.0
    %1200 = vmatpush1.msra.mxu0 0.0
    %1201 = vmatprep.subr.mxu0 0.0
    %1202 = vmatpush1.msra.mxu0 0.0
    %1203 = vmatprep.subr.mxu0 0.0
    %1204 = vmatpush1.msra.mxu0 0.0
    %1205 = vmatprep.subr.mxu0 0.0
    %1206 = vmatpush1.msra.mxu0 0.0
    %1207 = vmatprep.subr.mxu0 0.0
    %1208 = vmatpush1.msra.mxu0 0.0
    %1209 = vmatprep.subr.mxu0 0.0
    %1210 = vmatpush1.msra.mxu0 0.0
    %1211 = vmatprep.subr.mxu0 0.0
    %1212 = vmatpush1.msra.mxu0 0.0
    %1213 = vmatprep.subr.mxu0 0.0
    %1214 = vmatpush1.msra.mxu0 0.0
    %1215 = vmatprep.subr.mxu0 0.0
    %1216 = vmatpush1.msra.mxu0 0.0
    %1217 = vmatprep.subr.mxu0 0.0
    %1218 = vmatpush1.msra.mxu0 0.0
    %1219 = vmatprep.subr.mxu0 0.0
    %1220 = vmatpush1.msra.mxu0 0.0
    %1221 = vmatprep.subr.mxu0 0.0
    %1222 = vmatpush1.msra.mxu0 0.0
    %1223 = vmatprep.subr.mxu0 0.0
    %1224 = vmatpush1.msra.mxu0 0.0
    %1225 = vmatprep.subr.mxu0 0.0
    %1226 = vmatpush1.msra.mxu0 0.0
    %1227 = vmatprep.subr.mxu0 0.0
    %1228 = vmatpush1.msra.mxu0 0.0
    %1229 = vmatprep.subr.mxu0 0.0
    %1230 = vmatpush1.msra.mxu0 0.0
    %1231 = vmatprep.subr.mxu0 0.0
    %1232 = vmatpush1.msra.mxu0 0.0
    %1233 = vmatprep.subr.mxu0 0.0
    %1234 = vmatpush1.msra.mxu0 0.0
    %1235 = vmatprep.subr.mxu0 0.0
    %1236 = vmatpush1.msra.mxu0 0.0
    %1237 = vmatprep.subr.mxu0 0.0
    %1238 = vmatpush1.msra.mxu0 0.0
    %1239 = vmatprep.mubr.f32.mxu0 0.0
    %1240 = vmatmul.mubr.f32.gmra.mrb[0].mxu0 %v1173
    %v1241 = vpop.f32.mrb[0].mxu0
    %v1242 = vadd.f32 0.0, %v1241
    %v1243 = vpop.f32.mrb[0].mxu0
    %1244 = vdwg.mxu0
    %1245 = vmatprep.subr.mxu0 0.0
    %1246 = vmatpush1.msra.mxu0 %v177
    %1247 = vmatprep.subr.mxu0 0.0
    %1248 = vmatpush1.msra.mxu0 %v178
    %1249 = vmatprep.subr.mxu0 0.0
    %1250 = vmatpush1.msra.mxu0 %v179
    %1251 = vmatprep.subr.mxu0 0.0
    %1252 = vmatpush1.msra.mxu0 %v180
    %1253 = vmatprep.subr.mxu0 0.0
    %1254 = vmatpush1.msra.mxu0 0.0
    %1255 = vmatprep.subr.mxu0 0.0
    %1256 = vmatpush1.msra.mxu0 0.0
    %1257 = vmatprep.subr.mxu0 0.0
    %1258 = vmatpush1.msra.mxu0 0.0
    %1259 = vmatprep.subr.mxu0 0.0
    %1260 = vmatpush1.msra.mxu0 0.0
    %1261 = vmatprep.subr.mxu0 0.0
    %1262 = vmatpush1.msra.mxu0 0.0
    %1263 = vmatprep.subr.mxu0 0.0
    %1264 = vmatpush1.msra.mxu0 0.0
    %1265 = vmatprep.subr.mxu0 0.0
    %1266 = vmatpush1.msra.mxu0 0.0
    %1267 = vmatprep.subr.mxu0 0.0
    %1268 = vmatpush1.msra.mxu0 0.0
    %1269 = vmatprep.subr.mxu0 0.0
    %1270 = vmatpush1.msra.mxu0 0.0
    %1271 = vmatprep.subr.mxu0 0.0
    %1272 = vmatpush1.msra.mxu0 0.0
    %1273 = vmatprep.subr.mxu0 0.0
    %1274 = vmatpush1.msra.mxu0 0.0
    %1275 = vmatprep.subr.mxu0 0.0
    %1276 = vmatpush1.msra.mxu0 0.0
    %1277 = vmatprep.subr.mxu0 0.0
    %1278 = vmatpush1.msra.mxu0 0.0
    %1279 = vmatprep.subr.mxu0 0.0
    %1280 = vmatpush1.msra.mxu0 0.0
    %1281 = vmatprep.subr.mxu0 0.0
    %1282 = vmatpush1.msra.mxu0 0.0
    %1283 = vmatprep.subr.mxu0 0.0
    %1284 = vmatpush1.msra.mxu0 0.0
    %1285 = vmatprep.subr.mxu0 0.0
    %1286 = vmatpush1.msra.mxu0 0.0
    %1287 = vmatprep.subr.mxu0 0.0
    %1288 = vmatpush1.msra.mxu0 0.0
    %1289 = vmatprep.subr.mxu0 0.0
    %1290 = vmatpush1.msra.mxu0 0.0
    %1291 = vmatprep.subr.mxu0 0.0
    %1292 = vmatpush1.msra.mxu0 0.0
    %1293 = vmatprep.subr.mxu0 0.0
    %1294 = vmatpush1.msra.mxu0 0.0
    %1295 = vmatprep.subr.mxu0 0.0
    %1296 = vmatpush1.msra.mxu0 0.0
    %1297 = vmatprep.subr.mxu0 0.0
    %1298 = vmatpush1.msra.mxu0 0.0
    %1299 = vmatprep.subr.mxu0 0.0
    %1300 = vmatpush1.msra.mxu0 0.0
    %1301 = vmatprep.subr.mxu0 0.0
    %1302 = vmatpush1.msra.mxu0 0.0
    %1303 = vmatprep.subr.mxu0 0.0
    %1304 = vmatpush1.msra.mxu0 0.0
    %1305 = vmatprep.subr.mxu0 0.0
    %1306 = vmatpush1.msra.mxu0 0.0
    %1307 = vmatprep.subr.mxu0 0.0
    %1308 = vmatpush1.msra.mxu0 0.0
    %1309 = vmatprep.mubr.f32.mxu0 0.0
    %1310 = vmatmul.mubr.f32.gmra.mrb[0].mxu0 %v1173
    %v1311 = vpop.f32.mrb[0].mxu0
    %v1312 = vadd.f32 0.0, %v1311
    %v1313 = vpop.f32.mrb[0].mxu0
    %1314 = vdwg.mxu0
    %1315 = vmatprep.subr.mxu0 0.0
    %1316 = vmatpush1.msra.mxu0 %v181
    %1317 = vmatprep.subr.mxu0 0.0
    %1318 = vmatpush1.msra.mxu0 %v182
    %1319 = vmatprep.subr.mxu0 0.0
    %1320 = vmatpush1.msra.mxu0 %v183
    %1321 = vmatprep.subr.mxu0 0.0
    %1322 = vmatpush1.msra.mxu0 %v184
    %1323 = vmatprep.subr.mxu0 0.0
    %1324 = vmatpush1.msra.mxu0 0.0
    %1325 = vmatprep.subr.mxu0 0.0
    %1326 = vmatpush1.msra.mxu0 0.0
    %1327 = vmatprep.subr.mxu0 0.0
    %1328 = vmatpush1.msra.mxu0 0.0
    %1329 = vmatprep.subr.mxu0 0.0
    %1330 = vmatpush1.msra.mxu0 0.0
    %1331 = vmatprep.subr.mxu0 0.0
    %1332 = vmatpush1.msra.mxu0 0.0
    %1333 = vmatprep.subr.mxu0 0.0
    %1334 = vmatpush1.msra.mxu0 0.0
    %1335 = vmatprep.subr.mxu0 0.0
    %1336 = vmatpush1.msra.mxu0 0.0
    %1337 = vmatprep.subr.mxu0 0.0
    %1338 = vmatpush1.msra.mxu0 0.0
    %1339 = vmatprep.subr.mxu0 0.0
    %1340 = vmatpush1.msra.mxu0 0.0
    %1341 = vmatprep.subr.mxu0 0.0
    %1342 = vmatpush1.msra.mxu0 0.0
    %1343 = vmatprep.subr.mxu0 0.0
    %1344 = vmatpush1.msra.mxu0 0.0
    %1345 = vmatprep.subr.mxu0 0.0
    %1346 = vmatpush1.msra.mxu0 0.0
    %1347 = vmatprep.subr.mxu0 0.0
    %1348 = vmatpush1.msra.mxu0 0.0
    %1349 = vmatprep.subr.mxu0 0.0
    %1350 = vmatpush1.msra.mxu0 0.0
    %1351 = vmatprep.subr.mxu0 0.0
    %1352 = vmatpush1.msra.mxu0 0.0
    %1353 = vmatprep.subr.mxu0 0.0
    %1354 = vmatpush1.msra.mxu0 0.0
    %1355 = vmatprep.subr.mxu0 0.0
    %1356 = vmatpush1.msra.mxu0 0.0
    %1357 = vmatprep.subr.mxu0 0.0
    %1358 = vmatpush1.msra.mxu0 0.0
    %1359 = vmatprep.subr.mxu0 0.0
    %1360 = vmatpush1.msra.mxu0 0.0
    %1361 = vmatprep.subr.mxu0 0.0
    %1362 = vmatpush1.msra.mxu0 0.0
    %1363 = vmatprep.subr.mxu0 0.0
    %1364 = vmatpush1.msra.mxu0 0.0
    %1365 = vmatprep.subr.mxu0 0.0
    %1366 = vmatpush1.msra.mxu0 0.0
    %1367 = vmatprep.subr.mxu0 0.0
    %1368 = vmatpush1.msra.mxu0 0.0
    %1369 = vmatprep.subr.mxu0 0.0
    %1370 = vmatpush1.msra.mxu0 0.0
    %1371 = vmatprep.subr.mxu0 0.0
    %1372 = vmatpush1.msra.mxu0 0.0
    %1373 = vmatprep.subr.mxu0 0.0
    %1374 = vmatpush1.msra.mxu0 0.0
    %1375 = vmatprep.subr.mxu0 0.0
    %1376 = vmatpush1.msra.mxu0 0.0
    %1377 = vmatprep.subr.mxu0 0.0
    %1378 = vmatpush1.msra.mxu0 0.0
    %1379 = vmatprep.mubr.f32.mxu0 0.0
    %1380 = vmatmul.mubr.f32.gmra.mrb[0].mxu0 %v1173
    %v1381 = vpop.f32.mrb[0].mxu0
    %v1382 = vadd.f32 %v337, %v1381
    %v1383 = vpop.f32.mrb[0].mxu0
    %1384 = vdwg.mxu0
    %v1385 = vadd.f32 %v1169, %v1242
    %v1386 = vxor.u32 %v1385, 2147483648
    %v1387 = vmul.f32 %v1386, 1.442695
    %v1388 = vpow.pop %v1387
    %v1389 = vadd.f32 %v1388, 1.0
    %v1390 = vrcp.pop %v1389
    %v1391 = vmul.f32 1.0, %v1390
    %v1392 = vadd.f32 %v1170, %v1312
    %v1393 = vxor.u32 %v1392, 2147483648
    %v1394 = vmul.f32 %v1393, 1.442695
    %v1395 = vpow.pop %v1394
    %v1396 = vadd.f32 %v1395, 1.0
    %v1397 = vrcp.pop %v1396
    %v1398 = vmul.f32 1.0, %v1397
    %v1399 = vmul.f32 %v1391, %v1382
    %v1400 = vadd.f32 %v1171, %v1399
    %v1401 = vtanh.pop %v1400
    %v1402 = vsub.f32 1.0, %v1398
    %v1403 = vmul.f32 %v1402, %v1401
    %v1404 = vmul.f32 %v1398, %v1168
    %v1405 = vadd.f32 %v1403, %v1404
    %vm1406 = vcmp.gt.s32.totalorder %v186, 4
    %v1407 = vsel %vm1406, 1, 0
    %1408 = vset.pattern.permute.xlu0 0
    %1409 = vperm.xlu0 %1408, %v1407
    %v1410 = vpop.permute.xlu0 %1409
    %vm1411 = vcmp.eq.s32.totalorder %v1410, 1
    %v1412 = vsel %vm1411, %v1405, %v1168
    %v1413 = vld [vmem:[#allocation2 + $0xa] sm:$0x3]
    %v1414 = vld [vmem:[#allocation3 + $0xa] sm:$0x3]
    %v1415 = vld [vmem:[#allocation4 + $0xa] sm:$0x3]
    %v1417 = vsel %vm71, %v1412, 0
    %1419 = vmatprep.subr.mxu0 0.0
    %1420 = vmatpush1.msra.mxu0 %v173
    %1421 = vmatprep.subr.mxu0 0.0
    %1422 = vmatpush1.msra.mxu0 %v174
    %1423 = vmatprep.subr.mxu0 0.0
    %1424 = vmatpush1.msra.mxu0 %v175
    %1425 = vmatprep.subr.mxu0 0.0
    %1426 = vmatpush1.msra.mxu0 %v176
    %1427 = vmatprep.subr.mxu0 0.0
    %1428 = vmatpush1.msra.mxu0 0.0
    %1429 = vmatprep.subr.mxu0 0.0
    %1430 = vmatpush1.msra.mxu0 0.0
    %1431 = vmatprep.subr.mxu0 0.0
    %1432 = vmatpush1.msra.mxu0 0.0
    %1433 = vmatprep.subr.mxu0 0.0
    %1434 = vmatpush1.msra.mxu0 0.0
    %1435 = vmatprep.subr.mxu0 0.0
    %1436 = vmatpush1.msra.mxu0 0.0
    %1437 = vmatprep.subr.mxu0 0.0
    %1438 = vmatpush1.msra.mxu0 0.0
    %1439 = vmatprep.subr.mxu0 0.0
    %1440 = vmatpush1.msra.mxu0 0.0
    %1441 = vmatprep.subr.mxu0 0.0
    %1442 = vmatpush1.msra.mxu0 0.0
    %1443 = vmatprep.subr.mxu0 0.0
    %1444 = vmatpush1.msra.mxu0 0.0
    %1445 = vmatprep.subr.mxu0 0.0
    %1446 = vmatpush1.msra.mxu0 0.0
    %1447 = vmatprep.subr.mxu0 0.0
    %1448 = vmatpush1.msra.mxu0 0.0
    %1449 = vmatprep.subr.mxu0 0.0
    %1450 = vmatpush1.msra.mxu0 0.0
    %1451 = vmatprep.subr.mxu0 0.0
    %1452 = vmatpush1.msra.mxu0 0.0
    %1453 = vmatprep.subr.mxu0 0.0
    %1454 = vmatpush1.msra.mxu0 0.0
    %1455 = vmatprep.subr.mxu0 0.0
    %1456 = vmatpush1.msra.mxu0 0.0
    %1457 = vmatprep.subr.mxu0 0.0
    %1458 = vmatpush1.msra.mxu0 0.0
    %1459 = vmatprep.subr.mxu0 0.0
    %1460 = vmatpush1.msra.mxu0 0.0
    %1461 = vmatprep.subr.mxu0 0.0
    %1462 = vmatpush1.msra.mxu0 0.0
    %1463 = vmatprep.subr.mxu0 0.0
    %1464 = vmatpush1.msra.mxu0 0.0
    %1465 = vmatprep.subr.mxu0 0.0
    %1466 = vmatpush1.msra.mxu0 0.0
    %1467 = vmatprep.subr.mxu0 0.0
    %1468 = vmatpush1.msra.mxu0 0.0
    %1469 = vmatprep.subr.mxu0 0.0
    %1470 = vmatpush1.msra.mxu0 0.0
    %1471 = vmatprep.subr.mxu0 0.0
    %1472 = vmatpush1.msra.mxu0 0.0
    %1473 = vmatprep.subr.mxu0 0.0
    %1474 = vmatpush1.msra.mxu0 0.0
    %1475 = vmatprep.subr.mxu0 0.0
    %1476 = vmatpush1.msra.mxu0 0.0
    %1477 = vmatprep.subr.mxu0 0.0
    %1478 = vmatpush1.msra.mxu0 0.0
    %1479 = vmatprep.subr.mxu0 0.0
    %1480 = vmatpush1.msra.mxu0 0.0
    %1481 = vmatprep.subr.mxu0 0.0
    %1482 = vmatpush1.msra.mxu0 0.0
    %1483 = vmatprep.mubr.f32.mxu0 0.0
    %1484 = vmatmul.mubr.f32.gmra.mrb[0].mxu0 %v1417
    %v1485 = vpop.f32.mrb[0].mxu0
    %v1486 = vadd.f32 0.0, %v1485
    %v1487 = vpop.f32.mrb[0].mxu0
    %1488 = vdwg.mxu0
    %1489 = vmatprep.subr.mxu0 0.0
    %1490 = vmatpush1.msra.mxu0 %v177
    %1491 = vmatprep.subr.mxu0 0.0
    %1492 = vmatpush1.msra.mxu0 %v178
    %1493 = vmatprep.subr.mxu0 0.0
    %1494 = vmatpush1.msra.mxu0 %v179
    %1495 = vmatprep.subr.mxu0 0.0
    %1496 = vmatpush1.msra.mxu0 %v180
    %1497 = vmatprep.subr.mxu0 0.0
    %1498 = vmatpush1.msra.mxu0 0.0
    %1499 = vmatprep.subr.mxu0 0.0
    %1500 = vmatpush1.msra.mxu0 0.0
    %1501 = vmatprep.subr.mxu0 0.0
    %1502 = vmatpush1.msra.mxu0 0.0
    %1503 = vmatprep.subr.mxu0 0.0
    %1504 = vmatpush1.msra.mxu0 0.0
    %1505 = vmatprep.subr.mxu0 0.0
    %1506 = vmatpush1.msra.mxu0 0.0
    %1507 = vmatprep.subr.mxu0 0.0
    %1508 = vmatpush1.msra.mxu0 0.0
    %1509 = vmatprep.subr.mxu0 0.0
    %1510 = vmatpush1.msra.mxu0 0.0
    %1511 = vmatprep.subr.mxu0 0.0
    %1512 = vmatpush1.msra.mxu0 0.0
    %1513 = vmatprep.subr.mxu0 0.0
    %1514 = vmatpush1.msra.mxu0 0.0
    %1515 = vmatprep.subr.mxu0 0.0
    %1516 = vmatpush1.msra.mxu0 0.0
    %1517 = vmatprep.subr.mxu0 0.0
    %1518 = vmatpush1.msra.mxu0 0.0
    %1519 = vmatprep.subr.mxu0 0.0
    %1520 = vmatpush1.msra.mxu0 0.0
    %1521 = vmatprep.subr.mxu0 0.0
    %1522 = vmatpush1.msra.mxu0 0.0
    %1523 = vmatprep.subr.mxu0 0.0
    %1524 = vmatpush1.msra.mxu0 0.0
    %1525 = vmatprep.subr.mxu0 0.0
    %1526 = vmatpush1.msra.mxu0 0.0
    %1527 = vmatprep.subr.mxu0 0.0
    %1528 = vmatpush1.msra.mxu0 0.0
    %1529 = vmatprep.subr.mxu0 0.0
    %1530 = vmatpush1.msra.mxu0 0.0
    %1531 = vmatprep.subr.mxu0 0.0
    %1532 = vmatpush1.msra.mxu0 0.0
    %1533 = vmatprep.subr.mxu0 0.0
    %1534 = vmatpush1.msra.mxu0 0.0
    %1535 = vmatprep.subr.mxu0 0.0
    %1536 = vmatpush1.msra.mxu0 0.0
    %1537 = vmatprep.subr.mxu0 0.0
    %1538 = vmatpush1.msra.mxu0 0.0
    %1539 = vmatprep.subr.mxu0 0.0
    %1540 = vmatpush1.msra.mxu0 0.0
    %1541 = vmatprep.subr.mxu0 0.0
    %1542 = vmatpush1.msra.mxu0 0.0
    %1543 = vmatprep.subr.mxu0 0.0
    %1544 = vmatpush1.msra.mxu0 0.0
    %1545 = vmatprep.subr.mxu0 0.0
    %1546 = vmatpush1.msra.mxu0 0.0
    %1547 = vmatprep.subr.mxu0 0.0
    %1548 = vmatpush1.msra.mxu0 0.0
    %1549 = vmatprep.subr.mxu0 0.0
    %1550 = vmatpush1.msra.mxu0 0.0
    %1551 = vmatprep.subr.mxu0 0.0
    %1552 = vmatpush1.msra.mxu0 0.0
    %1553 = vmatprep.mubr.f32.mxu0 0.0
    %1554 = vmatmul.mubr.f32.gmra.mrb[0].mxu0 %v1417
    %v1555 = vpop.f32.mrb[0].mxu0
    %v1556 = vadd.f32 0.0, %v1555
    %v1557 = vpop.f32.mrb[0].mxu0
    %1558 = vdwg.mxu0
    %1559 = vmatprep.subr.mxu0 0.0
    %1560 = vmatpush1.msra.mxu0 %v181
    %1561 = vmatprep.subr.mxu0 0.0
    %1562 = vmatpush1.msra.mxu0 %v182
    %1563 = vmatprep.subr.mxu0 0.0
    %1564 = vmatpush1.msra.mxu0 %v183
    %1565 = vmatprep.subr.mxu0 0.0
    %1566 = vmatpush1.msra.mxu0 %v184
    %1567 = vmatprep.subr.mxu0 0.0
    %1568 = vmatpush1.msra.mxu0 0.0
    %1569 = vmatprep.subr.mxu0 0.0
    %1570 = vmatpush1.msra.mxu0 0.0
    %1571 = vmatprep.subr.mxu0 0.0
    %1572 = vmatpush1.msra.mxu0 0.0
    %1573 = vmatprep.subr.mxu0 0.0
    %1574 = vmatpush1.msra.mxu0 0.0
    %1575 = vmatprep.subr.mxu0 0.0
    %1576 = vmatpush1.msra.mxu0 0.0
    %1577 = vmatprep.subr.mxu0 0.0
    %1578 = vmatpush1.msra.mxu0 0.0
    %1579 = vmatprep.subr.mxu0 0.0
    %1580 = vmatpush1.msra.mxu0 0.0
    %1581 = vmatprep.subr.mxu0 0.0
    %1582 = vmatpush1.msra.mxu0 0.0
    %1583 = vmatprep.subr.mxu0 0.0
    %1584 = vmatpush1.msra.mxu0 0.0
    %1585 = vmatprep.subr.mxu0 0.0
    %1586 = vmatpush1.msra.mxu0 0.0
    %1587 = vmatprep.subr.mxu0 0.0
    %1588 = vmatpush1.msra.mxu0 0.0
    %1589 = vmatprep.subr.mxu0 0.0
    %1590 = vmatpush1.msra.mxu0 0.0
    %1591 = vmatprep.subr.mxu0 0.0
    %1592 = vmatpush1.msra.mxu0 0.0
    %1593 = vmatprep.subr.mxu0 0.0
    %1594 = vmatpush1.msra.mxu0 0.0
    %1595 = vmatprep.subr.mxu0 0.0
    %1596 = vmatpush1.msra.mxu0 0.0
    %1597 = vmatprep.subr.mxu0 0.0
    %1598 = vmatpush1.msra.mxu0 0.0
    %1599 = vmatprep.subr.mxu0 0.0
    %1600 = vmatpush1.msra.mxu0 0.0
    %1601 = vmatprep.subr.mxu0 0.0
    %1602 = vmatpush1.msra.mxu0 0.0
    %1603 = vmatprep.subr.mxu0 0.0
    %1604 = vmatpush1.msra.mxu0 0.0
    %1605 = vmatprep.subr.mxu0 0.0
    %1606 = vmatpush1.msra.mxu0 0.0
    %1607 = vmatprep.subr.mxu0 0.0
    %1608 = vmatpush1.msra.mxu0 0.0
    %1609 = vmatprep.subr.mxu0 0.0
    %1610 = vmatpush1.msra.mxu0 0.0
    %1611 = vmatprep.subr.mxu0 0.0
    %1612 = vmatpush1.msra.mxu0 0.0
    %1613 = vmatprep.subr.mxu0 0.0
    %1614 = vmatpush1.msra.mxu0 0.0
    %1615 = vmatprep.subr.mxu0 0.0
    %1616 = vmatpush1.msra.mxu0 0.0
    %1617 = vmatprep.subr.mxu0 0.0
    %1618 = vmatpush1.msra.mxu0 0.0
    %1619 = vmatprep.subr.mxu0 0.0
    %1620 = vmatpush1.msra.mxu0 0.0
    %1621 = vmatprep.subr.mxu0 0.0
    %1622 = vmatpush1.msra.mxu0 0.0
    %1623 = vmatprep.mubr.f32.mxu0 0.0
    %1624 = vmatmul.mubr.f32.gmra.mrb[0].mxu0 %v1417
    %v1625 = vpop.f32.mrb[0].mxu0
    %v1626 = vadd.f32 %v337, %v1625
    %v1627 = vpop.f32.mrb[0].mxu0
    %1628 = vdwg.mxu0
    %v1629 = vadd.f32 %v1413, %v1486
    %v1630 = vxor.u32 %v1629, 2147483648
    %v1631 = vmul.f32 %v1630, 1.442695
    %v1632 = vpow.pop %v1631
    %v1633 = vadd.f32 %v1632, 1.0
    %v1634 = vrcp.pop %v1633
    %v1635 = vmul.f32 1.0, %v1634
    %v1636 = vadd.f32 %v1414, %v1556
    %v1637 = vxor.u32 %v1636, 2147483648
    %v1638 = vmul.f32 %v1637, 1.442695
    %v1639 = vpow.pop %v1638
    %v1640 = vadd.f32 %v1639, 1.0
    %v1641 = vrcp.pop %v1640
    %v1642 = vmul.f32 1.0, %v1641
    %v1643 = vmul.f32 %v1635, %v1626
    %v1644 = vadd.f32 %v1415, %v1643
    %v1645 = vtanh.pop %v1644
    %v1646 = vsub.f32 1.0, %v1642
    %v1647 = vmul.f32 %v1646, %v1645
    %v1648 = vmul.f32 %v1642, %v1412
    %v1649 = vadd.f32 %v1647, %v1648
    %vm1650 = vcmp.gt.s32.totalorder %v186, 5
    %v1651 = vsel %vm1650, 1, 0
    %1652 = vset.pattern.permute.xlu0 0
    %1653 = vperm.xlu0 %1652, %v1651
    %v1654 = vpop.permute.xlu0 %1653
    %vm1655 = vcmp.eq.s32.totalorder %v1654, 1
    %v1656 = vsel %vm1655, %v1649, %v1412
    %v1657 = vld [vmem:[#allocation2 + $0xc] sm:$0x3]
    %v1658 = vld [vmem:[#allocation3 + $0xc] sm:$0x3]
    %v1659 = vld [vmem:[#allocation4 + $0xc] sm:$0x3]
    %v1661 = vsel %vm71, %v1656, 0
    %1663 = vmatprep.subr.mxu0 0.0
    %1664 = vmatpush1.msra.mxu0 %v173
    %1665 = vmatprep.subr.mxu0 0.0
    %1666 = vmatpush1.msra.mxu0 %v174
    %1667 = vmatprep.subr.mxu0 0.0
    %1668 = vmatpush1.msra.mxu0 %v175
    %1669 = vmatprep.subr.mxu0 0.0
    %1670 = vmatpush1.msra.mxu0 %v176
    %1671 = vmatprep.subr.mxu0 0.0
    %1672 = vmatpush1.msra.mxu0 0.0
    %1673 = vmatprep.subr.mxu0 0.0
    %1674 = vmatpush1.msra.mxu0 0.0
    %1675 = vmatprep.subr.mxu0 0.0
    %1676 = vmatpush1.msra.mxu0 0.0
    %1677 = vmatprep.subr.mxu0 0.0
    %1678 = vmatpush1.msra.mxu0 0.0
    %1679 = vmatprep.subr.mxu0 0.0
    %1680 = vmatpush1.msra.mxu0 0.0
    %1681 = vmatprep.subr.mxu0 0.0
    %1682 = vmatpush1.msra.mxu0 0.0
    %1683 = vmatprep.subr.mxu0 0.0
    %1684 = vmatpush1.msra.mxu0 0.0
    %1685 = vmatprep.subr.mxu0 0.0
    %1686 = vmatpush1.msra.mxu0 0.0
    %1687 = vmatprep.subr.mxu0 0.0
    %1688 = vmatpush1.msra.mxu0 0.0
    %1689 = vmatprep.subr.mxu0 0.0
    %1690 = vmatpush1.msra.mxu0 0.0
    %1691 = vmatprep.subr.mxu0 0.0
    %1692 = vmatpush1.msra.mxu0 0.0
    %1693 = vmatprep.subr.mxu0 0.0
    %1694 = vmatpush1.msra.mxu0 0.0
    %1695 = vmatprep.subr.mxu0 0.0
    %1696 = vmatpush1.msra.mxu0 0.0
    %1697 = vmatprep.subr.mxu0 0.0
    %1698 = vmatpush1.msra.mxu0 0.0
    %1699 = vmatprep.subr.mxu0 0.0
    %1700 = vmatpush1.msra.mxu0 0.0
    %1701 = vmatprep.subr.mxu0 0.0
    %1702 = vmatpush1.msra.mxu0 0.0
    %1703 = vmatprep.subr.mxu0 0.0
    %1704 = vmatpush1.msra.mxu0 0.0
    %1705 = vmatprep.subr.mxu0 0.0
    %1706 = vmatpush1.msra.mxu0 0.0
    %1707 = vmatprep.subr.mxu0 0.0
    %1708 = vmatpush1.msra.mxu0 0.0
    %1709 = vmatprep.subr.mxu0 0.0
    %1710 = vmatpush1.msra.mxu0 0.0
    %1711 = vmatprep.subr.mxu0 0.0
    %1712 = vmatpush1.msra.mxu0 0.0
    %1713 = vmatprep.subr.mxu0 0.0
    %1714 = vmatpush1.msra.mxu0 0.0
    %1715 = vmatprep.subr.mxu0 0.0
    %1716 = vmatpush1.msra.mxu0 0.0
    %1717 = vmatprep.subr.mxu0 0.0
    %1718 = vmatpush1.msra.mxu0 0.0
    %1719 = vmatprep.subr.mxu0 0.0
    %1720 = vmatpush1.msra.mxu0 0.0
    %1721 = vmatprep.subr.mxu0 0.0
    %1722 = vmatpush1.msra.mxu0 0.0
    %1723 = vmatprep.subr.mxu0 0.0
    %1724 = vmatpush1.msra.mxu0 0.0
    %1725 = vmatprep.subr.mxu0 0.0
    %1726 = vmatpush1.msra.mxu0 0.0
    %1727 = vmatprep.mubr.f32.mxu0 0.0
    %1728 = vmatmul.mubr.f32.gmra.mrb[0].mxu0 %v1661
    %v1729 = vpop.f32.mrb[0].mxu0
    %v1730 = vadd.f32 0.0, %v1729
    %v1731 = vpop.f32.mrb[0].mxu0
    %1732 = vdwg.mxu0
    %1733 = vmatprep.subr.mxu0 0.0
    %1734 = vmatpush1.msra.mxu0 %v177
    %1735 = vmatprep.subr.mxu0 0.0
    %1736 = vmatpush1.msra.mxu0 %v178
    %1737 = vmatprep.subr.mxu0 0.0
    %1738 = vmatpush1.msra.mxu0 %v179
    %1739 = vmatprep.subr.mxu0 0.0
    %1740 = vmatpush1.msra.mxu0 %v180
    %1741 = vmatprep.subr.mxu0 0.0
    %1742 = vmatpush1.msra.mxu0 0.0
    %1743 = vmatprep.subr.mxu0 0.0
    %1744 = vmatpush1.msra.mxu0 0.0
    %1745 = vmatprep.subr.mxu0 0.0
    %1746 = vmatpush1.msra.mxu0 0.0
    %1747 = vmatprep.subr.mxu0 0.0
    %1748 = vmatpush1.msra.mxu0 0.0
    %1749 = vmatprep.subr.mxu0 0.0
    %1750 = vmatpush1.msra.mxu0 0.0
    %1751 = vmatprep.subr.mxu0 0.0
    %1752 = vmatpush1.msra.mxu0 0.0
    %1753 = vmatprep.subr.mxu0 0.0
    %1754 = vmatpush1.msra.mxu0 0.0
    %1755 = vmatprep.subr.mxu0 0.0
    %1756 = vmatpush1.msra.mxu0 0.0
    %1757 = vmatprep.subr.mxu0 0.0
    %1758 = vmatpush1.msra.mxu0 0.0
    %1759 = vmatprep.subr.mxu0 0.0
    %1760 = vmatpush1.msra.mxu0 0.0
    %1761 = vmatprep.subr.mxu0 0.0
    %1762 = vmatpush1.msra.mxu0 0.0
    %1763 = vmatprep.subr.mxu0 0.0
    %1764 = vmatpush1.msra.mxu0 0.0
    %1765 = vmatprep.subr.mxu0 0.0
    %1766 = vmatpush1.msra.mxu0 0.0
    %1767 = vmatprep.subr.mxu0 0.0
    %1768 = vmatpush1.msra.mxu0 0.0
    %1769 = vmatprep.subr.mxu0 0.0
    %1770 = vmatpush1.msra.mxu0 0.0
    %1771 = vmatprep.subr.mxu0 0.0
    %1772 = vmatpush1.msra.mxu0 0.0
    %1773 = vmatprep.subr.mxu0 0.0
    %1774 = vmatpush1.msra.mxu0 0.0
    %1775 = vmatprep.subr.mxu0 0.0
    %1776 = vmatpush1.msra.mxu0 0.0
    %1777 = vmatprep.subr.mxu0 0.0
    %1778 = vmatpush1.msra.mxu0 0.0
    %1779 = vmatprep.subr.mxu0 0.0
    %1780 = vmatpush1.msra.mxu0 0.0
    %1781 = vmatprep.subr.mxu0 0.0
    %1782 = vmatpush1.msra.mxu0 0.0
    %1783 = vmatprep.subr.mxu0 0.0
    %1784 = vmatpush1.msra.mxu0 0.0
    %1785 = vmatprep.subr.mxu0 0.0
    %1786 = vmatpush1.msra.mxu0 0.0
    %1787 = vmatprep.subr.mxu0 0.0
    %1788 = vmatpush1.msra.mxu0 0.0
    %1789 = vmatprep.subr.mxu0 0.0
    %1790 = vmatpush1.msra.mxu0 0.0
    %1791 = vmatprep.subr.mxu0 0.0
    %1792 = vmatpush1.msra.mxu0 0.0
    %1793 = vmatprep.subr.mxu0 0.0
    %1794 = vmatpush1.msra.mxu0 0.0
    %1795 = vmatprep.subr.mxu0 0.0
    %1796 = vmatpush1.msra.mxu0 0.0
    %1797 = vmatprep.mubr.f32.mxu0 0.0
    %1798 = vmatmul.mubr.f32.gmra.mrb[0].mxu0 %v1661
    %v1799 = vpop.f32.mrb[0].mxu0
    %v1800 = vadd.f32 0.0, %v1799
    %v1801 = vpop.f32.mrb[0].mxu0
    %1802 = vdwg.mxu0
    %1803 = vmatprep.subr.mxu0 0.0
    %1804 = vmatpush1.msra.mxu0 %v181
    %1805 = vmatprep.subr.mxu0 0.0
    %1806 = vmatpush1.msra.mxu0 %v182
    %1807 = vmatprep.subr.mxu0 0.0
    %1808 = vmatpush1.msra.mxu0 %v183
    %1809 = vmatprep.subr.mxu0 0.0
    %1810 = vmatpush1.msra.mxu0 %v184
    %1811 = vmatprep.subr.mxu0 0.0
    %1812 = vmatpush1.msra.mxu0 0.0
    %1813 = vmatprep.subr.mxu0 0.0
    %1814 = vmatpush1.msra.mxu0 0.0
    %1815 = vmatprep.subr.mxu0 0.0
    %1816 = vmatpush1.msra.mxu0 0.0
    %1817 = vmatprep.subr.mxu0 0.0
    %1818 = vmatpush1.msra.mxu0 0.0
    %1819 = vmatprep.subr.mxu0 0.0
    %1820 = vmatpush1.msra.mxu0 0.0
    %1821 = vmatprep.subr.mxu0 0.0
    %1822 = vmatpush1.msra.mxu0 0.0
    %1823 = vmatprep.subr.mxu0 0.0
    %1824 = vmatpush1.msra.mxu0 0.0
    %1825 = vmatprep.subr.mxu0 0.0
    %1826 = vmatpush1.msra.mxu0 0.0
    %1827 = vmatprep.subr.mxu0 0.0
    %1828 = vmatpush1.msra.mxu0 0.0
    %1829 = vmatprep.subr.mxu0 0.0
    %1830 = vmatpush1.msra.mxu0 0.0
    %1831 = vmatprep.subr.mxu0 0.0
    %1832 = vmatpush1.msra.mxu0 0.0
    %1833 = vmatprep.subr.mxu0 0.0
    %1834 = vmatpush1.msra.mxu0 0.0
    %1835 = vmatprep.subr.mxu0 0.0
    %1836 = vmatpush1.msra.mxu0 0.0
    %1837 = vmatprep.subr.mxu0 0.0
    %1838 = vmatpush1.msra.mxu0 0.0
    %1839 = vmatprep.subr.mxu0 0.0
    %1840 = vmatpush1.msra.mxu0 0.0
    %1841 = vmatprep.subr.mxu0 0.0
    %1842 = vmatpush1.msra.mxu0 0.0
    %1843 = vmatprep.subr.mxu0 0.0
    %1844 = vmatpush1.msra.mxu0 0.0
    %1845 = vmatprep.subr.mxu0 0.0
    %1846 = vmatpush1.msra.mxu0 0.0
    %1847 = vmatprep.subr.mxu0 0.0
    %1848 = vmatpush1.msra.mxu0 0.0
    %1849 = vmatprep.subr.mxu0 0.0
    %1850 = vmatpush1.msra.mxu0 0.0
    %1851 = vmatprep.subr.mxu0 0.0
    %1852 = vmatpush1.msra.mxu0 0.0
    %1853 = vmatprep.subr.mxu0 0.0
    %1854 = vmatpush1.msra.mxu0 0.0
    %1855 = vmatprep.subr.mxu0 0.0
    %1856 = vmatpush1.msra.mxu0 0.0
    %1857 = vmatprep.subr.mxu0 0.0
    %1858 = vmatpush1.msra.mxu0 0.0
    %1859 = vmatprep.subr.mxu0 0.0
    %1860 = vmatpush1.msra.mxu0 0.0
    %1861 = vmatprep.subr.mxu0 0.0
    %1862 = vmatpush1.msra.mxu0 0.0
    %1863 = vmatprep.subr.mxu0 0.0
    %1864 = vmatpush1.msra.mxu0 0.0
    %1865 = vmatprep.subr.mxu0 0.0
    %1866 = vmatpush1.msra.mxu0 0.0
    %1867 = vmatprep.mubr.f32.mxu0 0.0
    %1868 = vmatmul.mubr.f32.gmra.mrb[0].mxu0 %v1661
    %v1869 = vpop.f32.mrb[0].mxu0
    %v1870 = vadd.f32 %v337, %v1869
    %v1871 = vpop.f32.mrb[0].mxu0
    %1872 = vdwg.mxu0
    %v1873 = vadd.f32 %v1657, %v1730
    %v1874 = vxor.u32 %v1873, 2147483648
    %v1875 = vmul.f32 %v1874, 1.442695
    %v1876 = vpow.pop %v1875
    %v1877 = vadd.f32 %v1876, 1.0
    %v1878 = vrcp.pop %v1877
    %v1879 = vmul.f32 1.0, %v1878
    %v1880 = vadd.f32 %v1658, %v1800
    %v1881 = vxor.u32 %v1880, 2147483648
    %v1882 = vmul.f32 %v1881, 1.442695
    %v1883 = vpow.pop %v1882
    %v1884 = vadd.f32 %v1883, 1.0
    %v1885 = vrcp.pop %v1884
    %v1886 = vmul.f32 1.0, %v1885
    %v1887 = vmul.f32 %v1879, %v1870
    %v1888 = vadd.f32 %v1659, %v1887
    %v1889 = vtanh.pop %v1888
    %v1890 = vsub.f32 1.0, %v1886
    %v1891 = vmul.f32 %v1890, %v1889
    %v1892 = vmul.f32 %v1886, %v1656
    %v1893 = vadd.f32 %v1891, %v1892
    %vm1894 = vcmp.gt.s32.totalorder %v186, 6
    %v1895 = vsel %vm1894, 1, 0
    %1896 = vset.pattern.permute.xlu0 0
    %1897 = vperm.xlu0 %1896, %v1895
    %v1898 = vpop.permute.xlu0 %1897
    %vm1899 = vcmp.eq.s32.totalorder %v1898, 1
    %v1900 = vsel %vm1899, %v1893, %v1656
    %v1901 = vld [vmem:[#allocation2 + $0xe] sm:$0x3]
    %v1902 = vld [vmem:[#allocation3 + $0xe] sm:$0x3]
    %v1903 = vld [vmem:[#allocation4 + $0xe] sm:$0x3]
    %v1905 = vsel %vm71, %v1900, 0
    %1907 = vmatprep.subr.mxu0 0.0
    %1908 = vmatpush1.msra.mxu0 %v173
    %1909 = vmatprep.subr.mxu0 0.0
    %1910 = vmatpush1.msra.mxu0 %v174
    %1911 = vmatprep.subr.mxu0 0.0
    %1912 = vmatpush1.msra.mxu0 %v175
    %1913 = vmatprep.subr.mxu0 0.0
    %1914 = vmatpush1.msra.mxu0 %v176
    %1915 = vmatprep.subr.mxu0 0.0
    %1916 = vmatpush1.msra.mxu0 0.0
    %1917 = vmatprep.subr.mxu0 0.0
    %1918 = vmatpush1.msra.mxu0 0.0
    %1919 = vmatprep.subr.mxu0 0.0
    %1920 = vmatpush1.msra.mxu0 0.0
    %1921 = vmatprep.subr.mxu0 0.0
    %1922 = vmatpush1.msra.mxu0 0.0
    %1923 = vmatprep.subr.mxu0 0.0
    %1924 = vmatpush1.msra.mxu0 0.0
    %1925 = vmatprep.subr.mxu0 0.0
    %1926 = vmatpush1.msra.mxu0 0.0
    %1927 = vmatprep.subr.mxu0 0.0
    %1928 = vmatpush1.msra.mxu0 0.0
    %1929 = vmatprep.subr.mxu0 0.0
    %1930 = vmatpush1.msra.mxu0 0.0
    %1931 = vmatprep.subr.mxu0 0.0
    %1932 = vmatpush1.msra.mxu0 0.0
    %1933 = vmatprep.subr.mxu0 0.0
    %1934 = vmatpush1.msra.mxu0 0.0
    %1935 = vmatprep.subr.mxu0 0.0
    %1936 = vmatpush1.msra.mxu0 0.0
    %1937 = vmatprep.subr.mxu0 0.0
    %1938 = vmatpush1.msra.mxu0 0.0
    %1939 = vmatprep.subr.mxu0 0.0
    %1940 = vmatpush1.msra.mxu0 0.0
    %1941 = vmatprep.subr.mxu0 0.0
    %1942 = vmatpush1.msra.mxu0 0.0
    %1943 = vmatprep.subr.mxu0 0.0
    %1944 = vmatpush1.msra.mxu0 0.0
    %1945 = vmatprep.subr.mxu0 0.0
    %1946 = vmatpush1.msra.mxu0 0.0
    %1947 = vmatprep.subr.mxu0 0.0
    %1948 = vmatpush1.msra.mxu0 0.0
    %1949 = vmatprep.subr.mxu0 0.0
    %1950 = vmatpush1.msra.mxu0 0.0
    %1951 = vmatprep.subr.mxu0 0.0
    %1952 = vmatpush1.msra.mxu0 0.0
    %1953 = vmatprep.subr.mxu0 0.0
    %1954 = vmatpush1.msra.mxu0 0.0
    %1955 = vmatprep.subr.mxu0 0.0
    %1956 = vmatpush1.msra.mxu0 0.0
    %1957 = vmatprep.subr.mxu0 0.0
    %1958 = vmatpush1.msra.mxu0 0.0
    %1959 = vmatprep.subr.mxu0 0.0
    %1960 = vmatpush1.msra.mxu0 0.0
    %1961 = vmatprep.subr.mxu0 0.0
    %1962 = vmatpush1.msra.mxu0 0.0
    %1963 = vmatprep.subr.mxu0 0.0
    %1964 = vmatpush1.msra.mxu0 0.0
    %1965 = vmatprep.subr.mxu0 0.0
    %1966 = vmatpush1.msra.mxu0 0.0
    %1967 = vmatprep.subr.mxu0 0.0
    %1968 = vmatpush1.msra.mxu0 0.0
    %1969 = vmatprep.subr.mxu0 0.0
    %1970 = vmatpush1.msra.mxu0 0.0
    %1971 = vmatprep.mubr.f32.mxu0 0.0
    %1972 = vmatmul.mubr.f32.gmra.mrb[0].mxu0 %v1905
    %v1973 = vpop.f32.mrb[0].mxu0
    %v1974 = vadd.f32 0.0, %v1973
    %v1975 = vpop.f32.mrb[0].mxu0
    %1976 = vdwg.mxu0
    %1977 = vmatprep.subr.mxu0 0.0
    %1978 = vmatpush1.msra.mxu0 %v177
    %1979 = vmatprep.subr.mxu0 0.0
    %1980 = vmatpush1.msra.mxu0 %v178
    %1981 = vmatprep.subr.mxu0 0.0
    %1982 = vmatpush1.msra.mxu0 %v179
    %1983 = vmatprep.subr.mxu0 0.0
    %1984 = vmatpush1.msra.mxu0 %v180
    %1985 = vmatprep.subr.mxu0 0.0
    %1986 = vmatpush1.msra.mxu0 0.0
    %1987 = vmatprep.subr.mxu0 0.0
    %1988 = vmatpush1.msra.mxu0 0.0
    %1989 = vmatprep.subr.mxu0 0.0
    %1990 = vmatpush1.msra.mxu0 0.0
    %1991 = vmatprep.subr.mxu0 0.0
    %1992 = vmatpush1.msra.mxu0 0.0
    %1993 = vmatprep.subr.mxu0 0.0
    %1994 = vmatpush1.msra.mxu0 0.0
    %1995 = vmatprep.subr.mxu0 0.0
    %1996 = vmatpush1.msra.mxu0 0.0
    %1997 = vmatprep.subr.mxu0 0.0
    %1998 = vmatpush1.msra.mxu0 0.0
    %1999 = vmatprep.subr.mxu0 0.0
    %2000 = vmatpush1.msra.mxu0 0.0
    %2001 = vmatprep.subr.mxu0 0.0
    %2002 = vmatpush1.msra.mxu0 0.0
    %2003 = vmatprep.subr.mxu0 0.0
    %2004 = vmatpush1.msra.mxu0 0.0
    %2005 = vmatprep.subr.mxu0 0.0
    %2006 = vmatpush1.msra.mxu0 0.0
    %2007 = vmatprep.subr.mxu0 0.0
    %2008 = vmatpush1.msra.mxu0 0.0
    %2009 = vmatprep.subr.mxu0 0.0
    %2010 = vmatpush1.msra.mxu0 0.0
    %2011 = vmatprep.subr.mxu0 0.0
    %2012 = vmatpush1.msra.mxu0 0.0
    %2013 = vmatprep.subr.mxu0 0.0
    %2014 = vmatpush1.msra.mxu0 0.0
    %2015 = vmatprep.subr.mxu0 0.0
    %2016 = vmatpush1.msra.mxu0 0.0
    %2017 = vmatprep.subr.mxu0 0.0
    %2018 = vmatpush1.msra.mxu0 0.0
    %2019 = vmatprep.subr.mxu0 0.0
    %2020 = vmatpush1.msra.mxu0 0.0
    %2021 = vmatprep.subr.mxu0 0.0
    %2022 = vmatpush1.msra.mxu0 0.0
    %2023 = vmatprep.subr.mxu0 0.0
    %2024 = vmatpush1.msra.mxu0 0.0
    %2025 = vmatprep.subr.mxu0 0.0
    %2026 = vmatpush1.msra.mxu0 0.0
    %2027 = vmatprep.subr.mxu0 0.0
    %2028 = vmatpush1.msra.mxu0 0.0
    %2029 = vmatprep.subr.mxu0 0.0
    %2030 = vmatpush1.msra.mxu0 0.0
    %2031 = vmatprep.subr.mxu0 0.0
    %2032 = vmatpush1.msra.mxu0 0.0
    %2033 = vmatprep.subr.mxu0 0.0
    %2034 = vmatpush1.msra.mxu0 0.0
    %2035 = vmatprep.subr.mxu0 0.0
    %2036 = vmatpush1.msra.mxu0 0.0
    %2037 = vmatprep.subr.mxu0 0.0
    %2038 = vmatpush1.msra.mxu0 0.0
    %2039 = vmatprep.subr.mxu0 0.0
    %2040 = vmatpush1.msra.mxu0 0.0
    %2041 = vmatprep.mubr.f32.mxu0 0.0
    %2042 = vmatmul.mubr.f32.gmra.mrb[0].mxu0 %v1905
    %v2043 = vpop.f32.mrb[0].mxu0
    %v2044 = vadd.f32 0.0, %v2043
    %v2045 = vpop.f32.mrb[0].mxu0
    %2046 = vdwg.mxu0
    %2047 = vmatprep.subr.mxu0 0.0
    %2048 = vmatpush1.msra.mxu0 %v181
    %2049 = vmatprep.subr.mxu0 0.0
    %2050 = vmatpush1.msra.mxu0 %v182
    %2051 = vmatprep.subr.mxu0 0.0
    %2052 = vmatpush1.msra.mxu0 %v183
    %2053 = vmatprep.subr.mxu0 0.0
    %2054 = vmatpush1.msra.mxu0 %v184
    %2055 = vmatprep.subr.mxu0 0.0
    %2056 = vmatpush1.msra.mxu0 0.0
    %2057 = vmatprep.subr.mxu0 0.0
    %2058 = vmatpush1.msra.mxu0 0.0
    %2059 = vmatprep.subr.mxu0 0.0
    %2060 = vmatpush1.msra.mxu0 0.0
    %2061 = vmatprep.subr.mxu0 0.0
    %2062 = vmatpush1.msra.mxu0 0.0
    %2063 = vmatprep.subr.mxu0 0.0
    %2064 = vmatpush1.msra.mxu0 0.0
    %2065 = vmatprep.subr.mxu0 0.0
    %2066 = vmatpush1.msra.mxu0 0.0
    %2067 = vmatprep.subr.mxu0 0.0
    %2068 = vmatpush1.msra.mxu0 0.0
    %2069 = vmatprep.subr.mxu0 0.0
    %2070 = vmatpush1.msra.mxu0 0.0
    %2071 = vmatprep.subr.mxu0 0.0
    %2072 = vmatpush1.msra.mxu0 0.0
    %2073 = vmatprep.subr.mxu0 0.0
    %2074 = vmatpush1.msra.mxu0 0.0
    %2075 = vmatprep.subr.mxu0 0.0
    %2076 = vmatpush1.msra.mxu0 0.0
    %2077 = vmatprep.subr.mxu0 0.0
    %2078 = vmatpush1.msra.mxu0 0.0
    %2079 = vmatprep.subr.mxu0 0.0
    %2080 = vmatpush1.msra.mxu0 0.0
    %2081 = vmatprep.subr.mxu0 0.0
    %2082 = vmatpush1.msra.mxu0 0.0
    %2083 = vmatprep.subr.mxu0 0.0
    %2084 = vmatpush1.msra.mxu0 0.0
    %2085 = vmatprep.subr.mxu0 0.0
    %2086 = vmatpush1.msra.mxu0 0.0
    %2087 = vmatprep.subr.mxu0 0.0
    %2088 = vmatpush1.msra.mxu0 0.0
    %2089 = vmatprep.subr.mxu0 0.0
    %2090 = vmatpush1.msra.mxu0 0.0
    %2091 = vmatprep.subr.mxu0 0.0
    %2092 = vmatpush1.msra.mxu0 0.0
    %2093 = vmatprep.subr.mxu0 0.0
    %2094 = vmatpush1.msra.mxu0 0.0
    %2095 = vmatprep.subr.mxu0 0.0
    %2096 = vmatpush1.msra.mxu0 0.0
    %2097 = vmatprep.subr.mxu0 0.0
    %2098 = vmatpush1.msra.mxu0 0.0
    %2099 = vmatprep.subr.mxu0 0.0
    %2100 = vmatpush1.msra.mxu0 0.0
    %2101 = vmatprep.subr.mxu0 0.0
    %2102 = vmatpush1.msra.mxu0 0.0
    %2103 = vmatprep.subr.mxu0 0.0
    %2104 = vmatpush1.msra.mxu0 0.0
    %2105 = vmatprep.subr.mxu0 0.0
    %2106 = vmatpush1.msra.mxu0 0.0
    %2107 = vmatprep.subr.mxu0 0.0
    %2108 = vmatpush1.msra.mxu0 0.0
    %2109 = vmatprep.subr.mxu0 0.0
    %2110 = vmatpush1.msra.mxu0 0.0
    %2111 = vmatprep.mubr.f32.mxu0 0.0
    %2112 = vmatmul.mubr.f32.gmra.mrb[0].mxu0 %v1905
    %v2113 = vpop.f32.mrb[0].mxu0
    %v2114 = vadd.f32 %v337, %v2113
    %v2115 = vpop.f32.mrb[0].mxu0
    %2116 = vdwg.mxu0
    %v2117 = vadd.f32 %v1901, %v1974
    %v2118 = vxor.u32 %v2117, 2147483648
    %v2119 = vmul.f32 %v2118, 1.442695
    %v2120 = vpow.pop %v2119
    %v2121 = vadd.f32 %v2120, 1.0
    %v2122 = vrcp.pop %v2121
    %v2123 = vmul.f32 1.0, %v2122
    %v2124 = vadd.f32 %v1902, %v2044
    %v2125 = vxor.u32 %v2124, 2147483648
    %v2126 = vmul.f32 %v2125, 1.442695
    %v2127 = vpow.pop %v2126
    %v2128 = vadd.f32 %v2127, 1.0
    %v2129 = vrcp.pop %v2128
    %v2130 = vmul.f32 1.0, %v2129
    %v2131 = vmul.f32 %v2123, %v2114
    %v2132 = vadd.f32 %v1903, %v2131
    %v2133 = vtanh.pop %v2132
    %v2134 = vsub.f32 1.0, %v2130
    %v2135 = vmul.f32 %v2134, %v2133
    %v2136 = vmul.f32 %v2130, %v1900
    %v2137 = vadd.f32 %v2135, %v2136
    %vm2138 = vcmp.gt.s32.totalorder %v186, 7
    %v2139 = vsel %vm2138, 1, 0
    %2140 = vset.pattern.permute.xlu0 0
    %2141 = vperm.xlu0 %2140, %v2139
    %v2142 = vpop.permute.xlu0 %2141
    %vm2143 = vcmp.eq.s32.totalorder %v2142, 1
    %v2144 = vsel %vm2143, %v2137, %v1900
    %vm2145 = vcmask 254976
    %2146 = vst.msk [vmem:[#allocation10] sm:$0x3] %vm2145, %v2144
    // Predicated region
    $region42: #{_dip_forward_impl.1} parent=1 // pred_check
      _
    $region43: #{_dip_forward_impl.1} parent=1 // pred_check_branch
      %2148 = sbr.rel (0) target = $region45
    $region44: #{_dip_forward_impl.1} parent=1 // pred_region
      %s2150 = ssub.s32 32, 32
      %2151 = vsyncadd [#allocation7], %s2150
      %s2153 = sshll.u32 [#allocation10], 4
      %s2154 = int_to_ptr.vmem [resolvable:$true] %s2153
      %2156 = dma.vmem_to_hbm [thread:$0]  %s2154, 32, %s8, [#allocation7]
    $region45: #{_dip_forward_impl.1} parent=1 // pred_fallthru
      _
    // Predicated region
    $region46: #{_dip_forward_impl.1} parent=1 // pred_check
      _
    $region47: #{_dip_forward_impl.1} parent=1 // pred_check_branch
      %2158 = sbr.rel (0) target = $region49
    $region48: #{_dip_forward_impl.1} parent=1 // pred_region
      %2159 = dma.done [#allocation7], 32
    $region49: #{_dip_forward_impl.1} parent=1 // pred_fallthru
      _
    %2160 = vsyncpa [#allocation6], 1
    %2161 = vsyncpa [#allocation9], 1
    %2162 = vsyncpa [#allocation7], 1

</llo_original>
